<compile_context>
chip_gen: v7x
topology: tpu7x:2x2x1
jax: 0.10.0
libtpu: 0.0.40
codegen_flags: <defaults>
</compile_context>

<pallas_src>
import functools

import jax
import jax.numpy as jnp
from jax import lax
from jax.experimental import pallas as pl
from jax.experimental.pallas import tpu as pltpu

EPS = 1e-5

_VMEM = pl.BlockSpec(memory_space=pltpu.MemorySpace.VMEM)


# ----------------------------- kernel ----------------------------------------


def _resblock_kernel(x_ref, w1_ref, w2_ref, w3_ref, wds_ref, bn_ref, o_ref,
                     *, kernel_sizes, has_downsample):
    """Fully fused ResBlock forward (training-mode BatchNorm), f32 compute.

    x_ref:   (N, Cin, L)    input, PyTorch NCL layout
    wi_ref:  (Cout, Ki*Ci)  conv weights, [o, k*Ci + c] = w[k, c, o]
    wds_ref: (Cout, Cin)    1x1 downsample weight (ignored when has_downsample=False)
    bn_ref:  (Cout, 8)      cols 0..3 = gamma(bn1,bn2,bn3,bn_res), cols 4..7 = beta
    o_ref:   (N, Cout, L)   output, NCL layout
    """
    N, Cin, L = x_ref.shape
    Cout = o_ref.shape[1]
    K1, K2, K3 = kernel_sizes
    NL = N * L
    inv_nl = 1.0 / NL

    def gamma(i):
        return bn_ref[:, i:i + 1]            # (Cout, 1)

    def beta(i):
        return bn_ref[:, 4 + i:5 + i]        # (Cout, 1)

    def bn_train(y2d, idx):
        """BatchNorm1d training forward on (Cout, N*L); one-pass stats, biased var."""
        s = jnp.sum(y2d, axis=1, keepdims=True)
        ss = jnp.sum(y2d * y2d, axis=1, keepdims=True)
        mean = s * inv_nl
        var = jnp.maximum(ss * inv_nl - mean * mean, 0.0)   # clamp f32 cancellation
        return (y2d - mean) * lax.rsqrt(var + EPS) * gamma(idx) + beta(idx)

    # NCL -> channel-major (Cin, N, L) once, inside the kernel (no wrapper HBM pass).
    x = jnp.transpose(x_ref[...], (1, 0, 2)).astype(jnp.float32)

    def conv_bn(h, w_ref, K, idx, relu):
        """Conv1d('same', no bias) + BatchNorm1d(train) + optional ReLU.

        h: (C, N, L) f32 channel-major. K per-tap matmuls accumulated in f32
        (no K-fold im2col expansion -> bounded peak VMEM).
        """
        C = h.shape[0]
        pad = K // 2
        if pad > 0:
            z = jnp.zeros((C, N, pad), jnp.float32)
            hp = jnp.concatenate([z, h, z], axis=2)           # (C, N, L + K - 1)
        else:
            hp = h
        acc = jnp.zeros((Cout, NL), jnp.float32)
        for k in range(K):                                    # static unroll, K <= 7
            tap = hp[:, :, k:k + L].reshape(C, NL)
            wk = w_ref[:, k * C:(k + 1) * C]                  # (Cout, C)
            acc = acc + jnp.dot(wk, tap, preferred_element_type=jnp.float32)
        y = bn_train(acc, idx)
        if relu:
            y = jnp.maximum(y, 0.0)
        return y.reshape(Cout, N, L)

    out = conv_bn(x,   w1_ref, K1, 0, relu=True)
    out = conv_bn(out, w2_ref, K2, 1, relu=True)
    out = conv_bn(out, w3_ref, K3, 2, relu=False)             # (Cout, N, L)

    # Residual: BN(x) when Cin == Cout (exact identity shortcut), else BN(downsample(x)).
    x2d = x.reshape(Cin, NL)
    if has_downsample:
        r = jnp.dot(wds_ref[...], x2d, preferred_element_type=jnp.float32)  # (Cout, NL)
    else:
        r = x2d
    res = bn_train(r, 3)

    y = jnp.maximum(out.reshape(Cout, NL) + res, 0.0)
    # Cast to output dtype BEFORE the layout change (halves transpose/store traffic
    # whenever the output is narrower than f32).
    y = y.astype(o_ref.dtype).reshape(Cout, N, L)
    o_ref[...] = jnp.transpose(y, (1, 0, 2))                  # (N, Cout, L), lane-dense L


# ----------------------------- wrapper ----------------------------------------


def res_block_forward(x_ncl, params, kernel_sizes):
    """Full ResBlock forward. x_ncl: (N, C_in, L) like PyTorch. Returns (N, C_out, L)."""
    assert all(k % 2 == 1 for k in kernel_sizes), "padding=K//2 is 'same' only for odd K"
    N, Cin, L = x_ncl.shape
    K1, K2, K3 = kernel_sizes
    Cout = params["w1"].shape[2]
    has_downsample = (Cin != Cout)

    def flat(w):   # (K, Ci, Cout) -> MXU-ready (Cout, K*Ci), done once in the wrapper.
        K, Ci, Co = w.shape
        return jnp.transpose(w.reshape(K * Ci, Co))

    w1, w2, w3 = flat(params["w1"]), flat(params["w2"]), flat(params["w3"])
    w_ds = jnp.transpose(params["w_ds"])                      # (Cout, Cin)

    # Pack all BN affine params into one (Cout, 8) tensor (one small VMEM ref).
    bn = jnp.transpose(jnp.concatenate(
        [params["bn1_g"], params["bn2_g"], params["bn3_g"], params["bn_r_g"],
         params["bn1_b"], params["bn2_b"], params["bn3_b"], params["bn_r_b"]], axis=0))

    # Scoped-VMEM limit sized to the fully resident f32 footprint (x, activations, padded
    # taps, accumulators, residual, output) with headroom; capped at 64 MiB (v7x-safe).
    act_elems = N * L * (3 * Cin + 9 * Cout)
    wt_elems = w1.size + w2.size + w3.size + w_ds.size + bn.size
    est_bytes = 4 * (act_elems + wt_elems + x_ncl.size + N * Cout * L)
    vmem_limit = int(min(64 << 20, max(32 << 20, 2 * est_bytes)))

    kernel = functools.partial(_resblock_kernel, kernel_sizes=tuple(kernel_sizes),
                               has_downsample=has_downsample)
    return pl.pallas_call(
        kernel,
        out_shape=jax.ShapeDtypeStruct((N, Cout, L), x_ncl.dtype),
        in_specs=[_VMEM] * 6,
        out_specs=_VMEM,
        compiler_params=pltpu.CompilerParams(vmem_limit_bytes=vmem_limit),
    )(x_ncl, w1, w2, w3, w_ds, bn)


# ----------------------------- pure-JAX reference ------------------------------


def res_block_reference(x_ncl, params, kernel_sizes):
    """XLA reference, f32 end to end (matches the kernel's numeric policy)."""
    def conv1d(x, w_kio, K):                                  # x: (N, C, L)
        w_oik = jnp.transpose(w_kio, (2, 1, 0))               # (Cout, Cin, K)
        return lax.conv_general_dilated(
            x, w_oik, window_strides=(1,), padding=[(K // 2, K // 2)],
            dimension_numbers=("NCH", "OIH", "NCH"))

    def bn(y, g, b):                                          # y: (N, C, L)
        mean = jnp.mean(y, axis=(0, 2), keepdims=True)
        var = jnp.mean(jnp.square(y - mean), axis=(0, 2), keepdims=True)
        return (y - mean) * lax.rsqrt(var + EPS) * g[:, :, None] + b[:, :, None]

    K1, K2, K3 = kernel_sizes
    out = jnp.maximum(bn(conv1d(x_ncl, params["w1"], K1), params["bn1_g"], params["bn1_b"]), 0.0)
    out = jnp.maximum(bn(conv1d(out, params["w2"], K2), params["bn2_g"], params["bn2_b"]), 0.0)
    out = bn(conv1d(out, params["w3"], K3), params["bn3_g"], params["bn3_b"])
    if x_ncl.shape[1] != params["w1"].shape[2]:
        res = jnp.einsum("ncl,cf->nfl", x_ncl, params["w_ds"])
    else:
        res = x_ncl
    res = bn(res, params["bn_r_g"], params["bn_r_b"])
    return jnp.maximum(out + res, 0.0).astype(x_ncl.dtype)


# ----------------------------- params / main ----------------------------------


def init_params(key, n_inputs, n_outputs, kernel_sizes):
    k1, k2, k3, k4 = jax.random.split(key, 4)

    def kaiming(k, K, cin, cout):
        std = (2.0 / (cin * K)) ** 0.5
        return jax.random.normal(k, (K, cin, cout), jnp.float32) * std

    def default_init(k, K, cin, cout):
        # deterministic stand-in for PyTorch's default Conv1d init
        bound = 1.0 / ((cin * K) ** 0.5)
        return jax.random.uniform(k, (K, cin, cout), jnp.float32, -bound, bound)

    gamma = jnp.ones((1, n_outputs), jnp.float32)
    beta = jnp.full((1, n_outputs), 0.001, jnp.float32)

    if n_inputs != n_outputs:
        w_ds = default_init(k4, 1, n_inputs, n_outputs)[0]     # (Cin, Cout)
    else:
        w_ds = jnp.eye(n_inputs, dtype=jnp.float32)            # unused: identity shortcut

    return {
        "w1": kaiming(k1, kernel_sizes[0], n_inputs, n_outputs),
        "w2": kaiming(k2, kernel_sizes[1], n_outputs, n_outputs),
        "w3": default_init(k3, kernel_sizes[2], n_outputs, n_outputs),  # relu=False -> default init
        "w_ds": w_ds,
        "bn1_g": gamma, "bn1_b": beta,
        "bn2_g": gamma, "bn2_b": beta,
        "bn3_g": gamma, "bn3_b": beta,
        "bn_r_g": gamma, "bn_r_b": beta,
    }


if __name__ == "__main__":
    N, C_IN, C_OUT, L = 2, 4, 8, 16
    KERNEL_SIZES = (7, 5, 3)

    key = jax.random.PRNGKey(0)
    kx, kp = jax.random.split(key)
    x = jax.random.normal(kx, (N, C_IN, L), jnp.float32)       # NCL, like PyTorch input
    params = init_params(kp, C_IN, C_OUT, KERNEL_SIZES)

    fwd = jax.jit(functools.partial(res_block_forward, kernel_sizes=KERNEL_SIZES))
    out = jax.block_until_ready(fwd(x, params))

    ref = jax.block_until_ready(res_block_reference(x, params, KERNEL_SIZES))

    assert out.shape == (N, C_OUT, L)
    assert bool(jnp.all(out >= 0.0))                           # final ReLU
    max_err = float(jnp.max(jnp.abs(out - ref)))
    assert bool(jnp.allclose(out, ref, rtol=1e-3, atol=1e-3)), f"max abs err = {max_err}"
    print("KERNEL_OK")
</pallas_src>

<mosaic_0001>
module attributes {stable_mosaic.version = 11 : i64} {
  func.func @_resblock_kernel(%arg0: memref<2x4x16xf32, #tpu.memory_space<vmem>>, %arg1: memref<8x28xf32, #tpu.memory_space<vmem>>, %arg2: memref<8x40xf32, #tpu.memory_space<vmem>>, %arg3: memref<8x24xf32, #tpu.memory_space<vmem>>, %arg4: memref<8x4xf32, #tpu.memory_space<vmem>>, %arg5: memref<8x8xf32, #tpu.memory_space<vmem>>, %arg6: memref<2x8x16xf32, #tpu.memory_space<vmem>>) attributes {dimension_semantics = [], scalar_prefetch = 0 : i64, scratch_operands = 0 : i64, tpu.core_type = #tpu.core_type<tc>} {
    %c0 = arith.constant 0 : index
    %c0_0 = arith.constant 0 : index
    %c0_1 = arith.constant 0 : index
    %0 = vector.load %arg0[%c0, %c0_0, %c0_1] : memref<2x4x16xf32, #tpu.memory_space<vmem>>, vector<2x4x16xf32>
    %1 = tpu.transpose %0, [1, 0, 2] : vector<2x4x16xf32> -> vector<4x2x16xf32>
    %cst = arith.constant 0.000000e+00 : f32
    %2 = vector.broadcast %cst : f32 to vector<4x2x3xf32>
    %3 = tpu.concatenate %2, %1, %2 in 2 : vector<4x2x3xf32>, vector<4x2x16xf32>, vector<4x2x3xf32> -> vector<4x2x22xf32>
    %cst_2 = arith.constant 0.000000e+00 : f32
    %4 = vector.broadcast %cst_2 : f32 to vector<8x32xf32>
    %5 = vector.extract_strided_slice %3 {offsets = [0, 0, 0], sizes = [4, 2, 16], strides = [1, 1, 1]} : vector<4x2x22xf32> to vector<4x2x16xf32>
    %6 = vector.shape_cast %5 : vector<4x2x16xf32> to vector<4x32xf32>
    %c0_3 = arith.constant 0 : index
    %c0_4 = arith.constant 0 : index
    %7 = vector.load %arg1[%c0_3, %c0_4] : memref<8x28xf32, #tpu.memory_space<vmem>>, vector<8x4xf32>
    %cst_5 = arith.constant dense<0.000000e+00> : vector<8x32xf32>
    %8 = tpu.matmul %7, %6, %cst_5 {dimension_numbers = #tpu.dot_dimension_numbers<[1], [0], [0], [1], [0, 0, 1, 1], [], []>} : vector<8x4xf32>, vector<4x32xf32>, vector<8x32xf32> -> vector<8x32xf32>
    %9 = arith.addf %4, %8 : vector<8x32xf32>
    %10 = vector.extract_strided_slice %3 {offsets = [0, 0, 1], sizes = [4, 2, 16], strides = [1, 1, 1]} : vector<4x2x22xf32> to vector<4x2x16xf32>
    %11 = vector.shape_cast %10 : vector<4x2x16xf32> to vector<4x32xf32>
    %c0_6 = arith.constant 0 : index
    %c4 = arith.constant 4 : index
    %12 = vector.load %arg1[%c0_6, %c4] : memref<8x28xf32, #tpu.memory_space<vmem>>, vector<8x4xf32>
    %cst_7 = arith.constant dense<0.000000e+00> : vector<8x32xf32>
    %13 = tpu.matmul %12, %11, %cst_7 {dimension_numbers = #tpu.dot_dimension_numbers<[1], [0], [0], [1], [0, 0, 1, 1], [], []>} : vector<8x4xf32>, vector<4x32xf32>, vector<8x32xf32> -> vector<8x32xf32>
    %14 = arith.addf %9, %13 : vector<8x32xf32>
    %15 = vector.extract_strided_slice %3 {offsets = [0, 0, 2], sizes = [4, 2, 16], strides = [1, 1, 1]} : vector<4x2x22xf32> to vector<4x2x16xf32>
    %16 = vector.shape_cast %15 : vector<4x2x16xf32> to vector<4x32xf32>
    %c0_8 = arith.constant 0 : index
    %c8 = arith.constant 8 : index
    %17 = vector.load %arg1[%c0_8, %c8] : memref<8x28xf32, #tpu.memory_space<vmem>>, vector<8x4xf32>
    %cst_9 = arith.constant dense<0.000000e+00> : vector<8x32xf32>
    %18 = tpu.matmul %17, %16, %cst_9 {dimension_numbers = #tpu.dot_dimension_numbers<[1], [0], [0], [1], [0, 0, 1, 1], [], []>} : vector<8x4xf32>, vector<4x32xf32>, vector<8x32xf32> -> vector<8x32xf32>
    %19 = arith.addf %14, %18 : vector<8x32xf32>
    %20 = vector.extract_strided_slice %3 {offsets = [0, 0, 3], sizes = [4, 2, 16], strides = [1, 1, 1]} : vector<4x2x22xf32> to vector<4x2x16xf32>
    %21 = vector.shape_cast %20 : vector<4x2x16xf32> to vector<4x32xf32>
    %c0_10 = arith.constant 0 : index
    %c12 = arith.constant 12 : index
    %22 = vector.load %arg1[%c0_10, %c12] : memref<8x28xf32, #tpu.memory_space<vmem>>, vector<8x4xf32>
    %cst_11 = arith.constant dense<0.000000e+00> : vector<8x32xf32>
    %23 = tpu.matmul %22, %21, %cst_11 {dimension_numbers = #tpu.dot_dimension_numbers<[1], [0], [0], [1], [0, 0, 1, 1], [], []>} : vector<8x4xf32>, vector<4x32xf32>, vector<8x32xf32> -> vector<8x32xf32>
    %24 = arith.addf %19, %23 : vector<8x32xf32>
    %25 = vector.extract_strided_slice %3 {offsets = [0, 0, 4], sizes = [4, 2, 16], strides = [1, 1, 1]} : vector<4x2x22xf32> to vector<4x2x16xf32>
    %26 = vector.shape_cast %25 : vector<4x2x16xf32> to vector<4x32xf32>
    %c0_12 = arith.constant 0 : index
    %c16 = arith.constant 16 : index
    %27 = vector.load %arg1[%c0_12, %c16] : memref<8x28xf32, #tpu.memory_space<vmem>>, vector<8x4xf32>
    %cst_13 = arith.constant dense<0.000000e+00> : vector<8x32xf32>
    %28 = tpu.matmul %27, %26, %cst_13 {dimension_numbers = #tpu.dot_dimension_numbers<[1], [0], [0], [1], [0, 0, 1, 1], [], []>} : vector<8x4xf32>, vector<4x32xf32>, vector<8x32xf32> -> vector<8x32xf32>
    %29 = arith.addf %24, %28 : vector<8x32xf32>
    %30 = vector.extract_strided_slice %3 {offsets = [0, 0, 5], sizes = [4, 2, 16], strides = [1, 1, 1]} : vector<4x2x22xf32> to vector<4x2x16xf32>
    %31 = vector.shape_cast %30 : vector<4x2x16xf32> to vector<4x32xf32>
    %c0_14 = arith.constant 0 : index
    %c20 = arith.constant 20 : index
    %32 = vector.load %arg1[%c0_14, %c20] : memref<8x28xf32, #tpu.memory_space<vmem>>, vector<8x4xf32>
    %cst_15 = arith.constant dense<0.000000e+00> : vector<8x32xf32>
    %33 = tpu.matmul %32, %31, %cst_15 {dimension_numbers = #tpu.dot_dimension_numbers<[1], [0], [0], [1], [0, 0, 1, 1], [], []>} : vector<8x4xf32>, vector<4x32xf32>, vector<8x32xf32> -> vector<8x32xf32>
    %34 = arith.addf %29, %33 : vector<8x32xf32>
    %35 = vector.extract_strided_slice %3 {offsets = [0, 0, 6], sizes = [4, 2, 16], strides = [1, 1, 1]} : vector<4x2x22xf32> to vector<4x2x16xf32>
    %36 = vector.shape_cast %35 : vector<4x2x16xf32> to vector<4x32xf32>
    %c0_16 = arith.constant 0 : index
    %c24 = arith.constant 24 : index
    %37 = vector.load %arg1[%c0_16, %c24] : memref<8x28xf32, #tpu.memory_space<vmem>>, vector<8x4xf32>
    %cst_17 = arith.constant dense<0.000000e+00> : vector<8x32xf32>
    %38 = tpu.matmul %37, %36, %cst_17 {dimension_numbers = #tpu.dot_dimension_numbers<[1], [0], [0], [1], [0, 0, 1, 1], [], []>} : vector<8x4xf32>, vector<4x32xf32>, vector<8x32xf32> -> vector<8x32xf32>
    %39 = arith.addf %34, %38 : vector<8x32xf32>
    %cst_18 = arith.constant dense<0.000000e+00> : vector<8xf32>
    %40 = vector.multi_reduction <add>, %39, %cst_18 [1] : vector<8x32xf32> to vector<8xf32>
    %41 = vector.shape_cast %40 : vector<8xf32> to vector<8x1xf32>
    %42 = arith.mulf %39, %39 : vector<8x32xf32>
    %cst_19 = arith.constant dense<0.000000e+00> : vector<8xf32>
    %43 = vector.multi_reduction <add>, %42, %cst_19 [1] : vector<8x32xf32> to vector<8xf32>
    %44 = vector.shape_cast %43 : vector<8xf32> to vector<8x1xf32>
    %cst_20 = arith.constant 3.125000e-02 : f32
    %45 = vector.broadcast %cst_20 : f32 to vector<8x1xf32>
    %46 = arith.mulf %41, %45 : vector<8x1xf32>
    %cst_21 = arith.constant 3.125000e-02 : f32
    %47 = vector.broadcast %cst_21 : f32 to vector<8x1xf32>
    %48 = arith.mulf %44, %47 : vector<8x1xf32>
    %49 = arith.mulf %46, %46 : vector<8x1xf32>
    %50 = arith.subf %48, %49 : vector<8x1xf32>
    %cst_22 = arith.constant 0.000000e+00 : f32
    %51 = vector.broadcast %cst_22 : f32 to vector<8x1xf32>
    %52 = arith.maximumf %50, %51 : vector<8x1xf32>
    %53 = vector.broadcast %46 : vector<8x1xf32> to vector<8x32xf32>
    %54 = arith.subf %39, %53 : vector<8x32xf32>
    %cst_23 = arith.constant 9.99999974E-6 : f32
    %55 = vector.broadcast %cst_23 : f32 to vector<8x1xf32>
    %56 = arith.addf %52, %55 : vector<8x1xf32>
    %57 = math.rsqrt %56 : vector<8x1xf32>
    %58 = vector.broadcast %57 : vector<8x1xf32> to vector<8x32xf32>
    %59 = arith.mulf %54, %58 : vector<8x32xf32>
    %c0_24 = arith.constant 0 : index
    %c0_25 = arith.constant 0 : index
    %60 = vector.load %arg5[%c0_24, %c0_25] : memref<8x8xf32, #tpu.memory_space<vmem>>, vector<8x1xf32>
    %61 = vector.broadcast %60 : vector<8x1xf32> to vector<8x32xf32>
    %62 = arith.mulf %59, %61 : vector<8x32xf32>
    %c0_26 = arith.constant 0 : index
    %c4_27 = arith.constant 4 : index
    %63 = vector.load %arg5[%c0_26, %c4_27] : memref<8x8xf32, #tpu.memory_space<vmem>>, vector<8x1xf32>
    %64 = vector.broadcast %63 : vector<8x1xf32> to vector<8x32xf32>
    %65 = arith.addf %62, %64 : vector<8x32xf32>
    %cst_28 = arith.constant 0.000000e+00 : f32
    %66 = vector.broadcast %cst_28 : f32 to vector<8x32xf32>
    %67 = arith.maximumf %65, %66 : vector<8x32xf32>
    %68 = vector.shape_cast %67 : vector<8x32xf32> to vector<8x2x16xf32>
    %cst_29 = arith.constant 0.000000e+00 : f32
    %69 = vector.broadcast %cst_29 : f32 to vector<8x2x2xf32>
    %70 = tpu.concatenate %69, %68, %69 in 2 : vector<8x2x2xf32>, vector<8x2x16xf32>, vector<8x2x2xf32> -> vector<8x2x20xf32>
    %cst_30 = arith.constant 0.000000e+00 : f32
    %71 = vector.broadcast %cst_30 : f32 to vector<8x32xf32>
    %72 = vector.extract_strided_slice %70 {offsets = [0, 0, 0], sizes = [8, 2, 16], strides = [1, 1, 1]} : vector<8x2x20xf32> to vector<8x2x16xf32>
    %73 = vector.shape_cast %72 : vector<8x2x16xf32> to vector<8x32xf32>
    %c0_31 = arith.constant 0 : index
    %c0_32 = arith.constant 0 : index
    %74 = vector.load %arg2[%c0_31, %c0_32] : memref<8x40xf32, #tpu.memory_space<vmem>>, vector<8x8xf32>
    %cst_33 = arith.constant dense<0.000000e+00> : vector<8x32xf32>
    %75 = tpu.matmul %74, %73, %cst_33 {dimension_numbers = #tpu.dot_dimension_numbers<[1], [0], [0], [1], [0, 0, 1, 1], [], []>} : vector<8x8xf32>, vector<8x32xf32>, vector<8x32xf32> -> vector<8x32xf32>
    %76 = arith.addf %71, %75 : vector<8x32xf32>
    %77 = vector.extract_strided_slice %70 {offsets = [0, 0, 1], sizes = [8, 2, 16], strides = [1, 1, 1]} : vector<8x2x20xf32> to vector<8x2x16xf32>
    %78 = vector.shape_cast %77 : vector<8x2x16xf32> to vector<8x32xf32>
    %c0_34 = arith.constant 0 : index
    %c8_35 = arith.constant 8 : index
    %79 = vector.load %arg2[%c0_34, %c8_35] : memref<8x40xf32, #tpu.memory_space<vmem>>, vector<8x8xf32>
    %cst_36 = arith.constant dense<0.000000e+00> : vector<8x32xf32>
    %80 = tpu.matmul %79, %78, %cst_36 {dimension_numbers = #tpu.dot_dimension_numbers<[1], [0], [0], [1], [0, 0, 1, 1], [], []>} : vector<8x8xf32>, vector<8x32xf32>, vector<8x32xf32> -> vector<8x32xf32>
    %81 = arith.addf %76, %80 : vector<8x32xf32>
    %82 = vector.extract_strided_slice %70 {offsets = [0, 0, 2], sizes = [8, 2, 16], strides = [1, 1, 1]} : vector<8x2x20xf32> to vector<8x2x16xf32>
    %83 = vector.shape_cast %82 : vector<8x2x16xf32> to vector<8x32xf32>
    %c0_37 = arith.constant 0 : index
    %c16_38 = arith.constant 16 : index
    %84 = vector.load %arg2[%c0_37, %c16_38] : memref<8x40xf32, #tpu.memory_space<vmem>>, vector<8x8xf32>
    %cst_39 = arith.constant dense<0.000000e+00> : vector<8x32xf32>
    %85 = tpu.matmul %84, %83, %cst_39 {dimension_numbers = #tpu.dot_dimension_numbers<[1], [0], [0], [1], [0, 0, 1, 1], [], []>} : vector<8x8xf32>, vector<8x32xf32>, vector<8x32xf32> -> vector<8x32xf32>
    %86 = arith.addf %81, %85 : vector<8x32xf32>
    %87 = vector.extract_strided_slice %70 {offsets = [0, 0, 3], sizes = [8, 2, 16], strides = [1, 1, 1]} : vector<8x2x20xf32> to vector<8x2x16xf32>
    %88 = vector.shape_cast %87 : vector<8x2x16xf32> to vector<8x32xf32>
    %c0_40 = arith.constant 0 : index
    %c24_41 = arith.constant 24 : index
    %89 = vector.load %arg2[%c0_40, %c24_41] : memref<8x40xf32, #tpu.memory_space<vmem>>, vector<8x8xf32>
    %cst_42 = arith.constant dense<0.000000e+00> : vector<8x32xf32>
    %90 = tpu.matmul %89, %88, %cst_42 {dimension_numbers = #tpu.dot_dimension_numbers<[1], [0], [0], [1], [0, 0, 1, 1], [], []>} : vector<8x8xf32>, vector<8x32xf32>, vector<8x32xf32> -> vector<8x32xf32>
    %91 = arith.addf %86, %90 : vector<8x32xf32>
    %92 = vector.extract_strided_slice %70 {offsets = [0, 0, 4], sizes = [8, 2, 16], strides = [1, 1, 1]} : vector<8x2x20xf32> to vector<8x2x16xf32>
    %93 = vector.shape_cast %92 : vector<8x2x16xf32> to vector<8x32xf32>
    %c0_43 = arith.constant 0 : index
    %c32 = arith.constant 32 : index
    %94 = vector.load %arg2[%c0_43, %c32] : memref<8x40xf32, #tpu.memory_space<vmem>>, vector<8x8xf32>
    %cst_44 = arith.constant dense<0.000000e+00> : vector<8x32xf32>
    %95 = tpu.matmul %94, %93, %cst_44 {dimension_numbers = #tpu.dot_dimension_numbers<[1], [0], [0], [1], [0, 0, 1, 1], [], []>} : vector<8x8xf32>, vector<8x32xf32>, vector<8x32xf32> -> vector<8x32xf32>
    %96 = arith.addf %91, %95 : vector<8x32xf32>
    %cst_45 = arith.constant dense<0.000000e+00> : vector<8xf32>
    %97 = vector.multi_reduction <add>, %96, %cst_45 [1] : vector<8x32xf32> to vector<8xf32>
    %98 = vector.shape_cast %97 : vector<8xf32> to vector<8x1xf32>
    %99 = arith.mulf %96, %96 : vector<8x32xf32>
    %cst_46 = arith.constant dense<0.000000e+00> : vector<8xf32>
    %100 = vector.multi_reduction <add>, %99, %cst_46 [1] : vector<8x32xf32> to vector<8xf32>
    %101 = vector.shape_cast %100 : vector<8xf32> to vector<8x1xf32>
    %cst_47 = arith.constant 3.125000e-02 : f32
    %102 = vector.broadcast %cst_47 : f32 to vector<8x1xf32>
    %103 = arith.mulf %98, %102 : vector<8x1xf32>
    %cst_48 = arith.constant 3.125000e-02 : f32
    %104 = vector.broadcast %cst_48 : f32 to vector<8x1xf32>
    %105 = arith.mulf %101, %104 : vector<8x1xf32>
    %106 = arith.mulf %103, %103 : vector<8x1xf32>
    %107 = arith.subf %105, %106 : vector<8x1xf32>
    %cst_49 = arith.constant 0.000000e+00 : f32
    %108 = vector.broadcast %cst_49 : f32 to vector<8x1xf32>
    %109 = arith.maximumf %107, %108 : vector<8x1xf32>
    %110 = vector.broadcast %103 : vector<8x1xf32> to vector<8x32xf32>
    %111 = arith.subf %96, %110 : vector<8x32xf32>
    %cst_50 = arith.constant 9.99999974E-6 : f32
    %112 = vector.broadcast %cst_50 : f32 to vector<8x1xf32>
    %113 = arith.addf %109, %112 : vector<8x1xf32>
    %114 = math.rsqrt %113 : vector<8x1xf32>
    %115 = vector.broadcast %114 : vector<8x1xf32> to vector<8x32xf32>
    %116 = arith.mulf %111, %115 : vector<8x32xf32>
    %c0_51 = arith.constant 0 : index
    %c1 = arith.constant 1 : index
    %117 = vector.load %arg5[%c0_51, %c1] : memref<8x8xf32, #tpu.memory_space<vmem>>, vector<8x1xf32>
    %118 = vector.broadcast %117 : vector<8x1xf32> to vector<8x32xf32>
    %119 = arith.mulf %116, %118 : vector<8x32xf32>
    %c0_52 = arith.constant 0 : index
    %c5 = arith.constant 5 : index
    %120 = vector.load %arg5[%c0_52, %c5] : memref<8x8xf32, #tpu.memory_space<vmem>>, vector<8x1xf32>
    %121 = vector.broadcast %120 : vector<8x1xf32> to vector<8x32xf32>
    %122 = arith.addf %119, %121 : vector<8x32xf32>
    %cst_53 = arith.constant 0.000000e+00 : f32
    %123 = vector.broadcast %cst_53 : f32 to vector<8x32xf32>
    %124 = arith.maximumf %122, %123 : vector<8x32xf32>
    %125 = vector.shape_cast %124 : vector<8x32xf32> to vector<8x2x16xf32>
    %cst_54 = arith.constant 0.000000e+00 : f32
    %126 = vector.broadcast %cst_54 : f32 to vector<8x2x1xf32>
    %127 = tpu.concatenate %126, %125, %126 in 2 : vector<8x2x1xf32>, vector<8x2x16xf32>, vector<8x2x1xf32> -> vector<8x2x18xf32>
    %cst_55 = arith.constant 0.000000e+00 : f32
    %128 = vector.broadcast %cst_55 : f32 to vector<8x32xf32>
    %129 = vector.extract_strided_slice %127 {offsets = [0, 0, 0], sizes = [8, 2, 16], strides = [1, 1, 1]} : vector<8x2x18xf32> to vector<8x2x16xf32>
    %130 = vector.shape_cast %129 : vector<8x2x16xf32> to vector<8x32xf32>
    %c0_56 = arith.constant 0 : index
    %c0_57 = arith.constant 0 : index
    %131 = vector.load %arg3[%c0_56, %c0_57] : memref<8x24xf32, #tpu.memory_space<vmem>>, vector<8x8xf32>
    %cst_58 = arith.constant dense<0.000000e+00> : vector<8x32xf32>
    %132 = tpu.matmul %131, %130, %cst_58 {dimension_numbers = #tpu.dot_dimension_numbers<[1], [0], [0], [1], [0, 0, 1, 1], [], []>} : vector<8x8xf32>, vector<8x32xf32>, vector<8x32xf32> -> vector<8x32xf32>
    %133 = arith.addf %128, %132 : vector<8x32xf32>
    %134 = vector.extract_strided_slice %127 {offsets = [0, 0, 1], sizes = [8, 2, 16], strides = [1, 1, 1]} : vector<8x2x18xf32> to vector<8x2x16xf32>
    %135 = vector.shape_cast %134 : vector<8x2x16xf32> to vector<8x32xf32>
    %c0_59 = arith.constant 0 : index
    %c8_60 = arith.constant 8 : index
    %136 = vector.load %arg3[%c0_59, %c8_60] : memref<8x24xf32, #tpu.memory_space<vmem>>, vector<8x8xf32>
    %cst_61 = arith.constant dense<0.000000e+00> : vector<8x32xf32>
    %137 = tpu.matmul %136, %135, %cst_61 {dimension_numbers = #tpu.dot_dimension_numbers<[1], [0], [0], [1], [0, 0, 1, 1], [], []>} : vector<8x8xf32>, vector<8x32xf32>, vector<8x32xf32> -> vector<8x32xf32>
    %138 = arith.addf %133, %137 : vector<8x32xf32>
    %139 = vector.extract_strided_slice %127 {offsets = [0, 0, 2], sizes = [8, 2, 16], strides = [1, 1, 1]} : vector<8x2x18xf32> to vector<8x2x16xf32>
    %140 = vector.shape_cast %139 : vector<8x2x16xf32> to vector<8x32xf32>
    %c0_62 = arith.constant 0 : index
    %c16_63 = arith.constant 16 : index
    %141 = vector.load %arg3[%c0_62, %c16_63] : memref<8x24xf32, #tpu.memory_space<vmem>>, vector<8x8xf32>
    %cst_64 = arith.constant dense<0.000000e+00> : vector<8x32xf32>
    %142 = tpu.matmul %141, %140, %cst_64 {dimension_numbers = #tpu.dot_dimension_numbers<[1], [0], [0], [1], [0, 0, 1, 1], [], []>} : vector<8x8xf32>, vector<8x32xf32>, vector<8x32xf32> -> vector<8x32xf32>
    %143 = arith.addf %138, %142 : vector<8x32xf32>
    %cst_65 = arith.constant dense<0.000000e+00> : vector<8xf32>
    %144 = vector.multi_reduction <add>, %143, %cst_65 [1] : vector<8x32xf32> to vector<8xf32>
    %145 = vector.shape_cast %144 : vector<8xf32> to vector<8x1xf32>
    %146 = arith.mulf %143, %143 : vector<8x32xf32>
    %cst_66 = arith.constant dense<0.000000e+00> : vector<8xf32>
    %147 = vector.multi_reduction <add>, %146, %cst_66 [1] : vector<8x32xf32> to vector<8xf32>
    %148 = vector.shape_cast %147 : vector<8xf32> to vector<8x1xf32>
    %cst_67 = arith.constant 3.125000e-02 : f32
    %149 = vector.broadcast %cst_67 : f32 to vector<8x1xf32>
    %150 = arith.mulf %145, %149 : vector<8x1xf32>
    %cst_68 = arith.constant 3.125000e-02 : f32
    %151 = vector.broadcast %cst_68 : f32 to vector<8x1xf32>
    %152 = arith.mulf %148, %151 : vector<8x1xf32>
    %153 = arith.mulf %150, %150 : vector<8x1xf32>
    %154 = arith.subf %152, %153 : vector<8x1xf32>
    %cst_69 = arith.constant 0.000000e+00 : f32
    %155 = vector.broadcast %cst_69 : f32 to vector<8x1xf32>
    %156 = arith.maximumf %154, %155 : vector<8x1xf32>
    %157 = vector.broadcast %150 : vector<8x1xf32> to vector<8x32xf32>
    %158 = arith.subf %143, %157 : vector<8x32xf32>
    %cst_70 = arith.constant 9.99999974E-6 : f32
    %159 = vector.broadcast %cst_70 : f32 to vector<8x1xf32>
    %160 = arith.addf %156, %159 : vector<8x1xf32>
    %161 = math.rsqrt %160 : vector<8x1xf32>
    %162 = vector.broadcast %161 : vector<8x1xf32> to vector<8x32xf32>
    %163 = arith.mulf %158, %162 : vector<8x32xf32>
    %c0_71 = arith.constant 0 : index
    %c2 = arith.constant 2 : index
    %164 = vector.load %arg5[%c0_71, %c2] : memref<8x8xf32, #tpu.memory_space<vmem>>, vector<8x1xf32>
    %165 = vector.broadcast %164 : vector<8x1xf32> to vector<8x32xf32>
    %166 = arith.mulf %163, %165 : vector<8x32xf32>
    %c0_72 = arith.constant 0 : index
    %c6 = arith.constant 6 : index
    %167 = vector.load %arg5[%c0_72, %c6] : memref<8x8xf32, #tpu.memory_space<vmem>>, vector<8x1xf32>
    %168 = vector.broadcast %167 : vector<8x1xf32> to vector<8x32xf32>
    %169 = arith.addf %166, %168 : vector<8x32xf32>
    %170 = vector.shape_cast %169 : vector<8x32xf32> to vector<8x2x16xf32>
    %171 = vector.shape_cast %1 : vector<4x2x16xf32> to vector<4x32xf32>
    %c0_73 = arith.constant 0 : index
    %c0_74 = arith.constant 0 : index
    %172 = vector.load %arg4[%c0_73, %c0_74] : memref<8x4xf32, #tpu.memory_space<vmem>>, vector<8x4xf32>
    %cst_75 = arith.constant dense<0.000000e+00> : vector<8x32xf32>
    %173 = tpu.matmul %172, %171, %cst_75 {dimension_numbers = #tpu.dot_dimension_numbers<[1], [0], [0], [1], [0, 0, 1, 1], [], []>} : vector<8x4xf32>, vector<4x32xf32>, vector<8x32xf32> -> vector<8x32xf32>
    %cst_76 = arith.constant dense<0.000000e+00> : vector<8xf32>
    %174 = vector.multi_reduction <add>, %173, %cst_76 [1] : vector<8x32xf32> to vector<8xf32>
    %175 = vector.shape_cast %174 : vector<8xf32> to vector<8x1xf32>
    %176 = arith.mulf %173, %173 : vector<8x32xf32>
    %cst_77 = arith.constant dense<0.000000e+00> : vector<8xf32>
    %177 = vector.multi_reduction <add>, %176, %cst_77 [1] : vector<8x32xf32> to vector<8xf32>
    %178 = vector.shape_cast %177 : vector<8xf32> to vector<8x1xf32>
    %cst_78 = arith.constant 3.125000e-02 : f32
    %179 = vector.broadcast %cst_78 : f32 to vector<8x1xf32>
    %180 = arith.mulf %175, %179 : vector<8x1xf32>
    %cst_79 = arith.constant 3.125000e-02 : f32
    %181 = vector.broadcast %cst_79 : f32 to vector<8x1xf32>
    %182 = arith.mulf %178, %181 : vector<8x1xf32>
    %183 = arith.mulf %180, %180 : vector<8x1xf32>
    %184 = arith.subf %182, %183 : vector<8x1xf32>
    %cst_80 = arith.constant 0.000000e+00 : f32
    %185 = vector.broadcast %cst_80 : f32 to vector<8x1xf32>
    %186 = arith.maximumf %184, %185 : vector<8x1xf32>
    %187 = vector.broadcast %180 : vector<8x1xf32> to vector<8x32xf32>
    %188 = arith.subf %173, %187 : vector<8x32xf32>
    %cst_81 = arith.constant 9.99999974E-6 : f32
    %189 = vector.broadcast %cst_81 : f32 to vector<8x1xf32>
    %190 = arith.addf %186, %189 : vector<8x1xf32>
    %191 = math.rsqrt %190 : vector<8x1xf32>
    %192 = vector.broadcast %191 : vector<8x1xf32> to vector<8x32xf32>
    %193 = arith.mulf %188, %192 : vector<8x32xf32>
    %c0_82 = arith.constant 0 : index
    %c3 = arith.constant 3 : index
    %194 = vector.load %arg5[%c0_82, %c3] : memref<8x8xf32, #tpu.memory_space<vmem>>, vector<8x1xf32>
    %195 = vector.broadcast %194 : vector<8x1xf32> to vector<8x32xf32>
    %196 = arith.mulf %193, %195 : vector<8x32xf32>
    %c0_83 = arith.constant 0 : index
    %c7 = arith.constant 7 : index
    %197 = vector.load %arg5[%c0_83, %c7] : memref<8x8xf32, #tpu.memory_space<vmem>>, vector<8x1xf32>
    %198 = vector.broadcast %197 : vector<8x1xf32> to vector<8x32xf32>
    %199 = arith.addf %196, %198 : vector<8x32xf32>
    %200 = vector.shape_cast %170 : vector<8x2x16xf32> to vector<8x32xf32>
    %201 = arith.addf %200, %199 : vector<8x32xf32>
    %cst_84 = arith.constant 0.000000e+00 : f32
    %202 = vector.broadcast %cst_84 : f32 to vector<8x32xf32>
    %203 = arith.maximumf %201, %202 : vector<8x32xf32>
    %204 = vector.shape_cast %203 : vector<8x32xf32> to vector<8x2x16xf32>
    %205 = tpu.transpose %204, [1, 0, 2] : vector<8x2x16xf32> -> vector<2x8x16xf32>
    %c0_85 = arith.constant 0 : index
    %c0_86 = arith.constant 0 : index
    %c0_87 = arith.constant 0 : index
    %206 = vector.load %arg6[%c0_85, %c0_86, %c0_87] : memref<2x8x16xf32, #tpu.memory_space<vmem>>, vector<2x8x16xf32>
    tpu.vector_store %arg6[%c0_85, %c0_86, %c0_87], %205 {strides = array<i32>} : memref<2x8x16xf32, #tpu.memory_space<vmem>>, vector<2x8x16xf32>,
    return
  }
}

</mosaic_0001>

<llo_original>
// kernel: res_block_forward.1
$region0: #{res_block_forward.1}
  #allocation0 [shape = 'u32[]', space=smem, size = 0x4, offset = 0x4, fixed_abs, tag = 'smem constant byte address 0x4 - core index']
  #allocation1 [shape = 'u32[144,128]{1,0:T(1,128)}', space=vmem, size = 0x12000, scoped, tag = 'internal scratch']
  %s0 = inlined_call_operand.vmem [shape: f32[2,4,16], index: 0, kind: input, shape index: {}]
  %s1 = inlined_call_operand.vmem [shape: f32[8,28], index: 1, kind: input, shape index: {}]
  %s2 = inlined_call_operand.vmem [shape: f32[8,40], index: 2, kind: input, shape index: {}]
  %s3 = inlined_call_operand.vmem [shape: f32[8,24], index: 3, kind: input, shape index: {}]
  %s4 = inlined_call_operand.vmem [shape: f32[8,4], index: 4, kind: input, shape index: {}]
  %s5 = inlined_call_operand.vmem [shape: f32[8,8], index: 5, kind: input, shape index: {}]
  %s6 = inlined_call_operand.hbm [shape: f32[2,8,16], index: 6, kind: output, shape index: {}]
  %s7 = sld [smem:[#allocation0]]
  $region34: #{res_block_forward.1} parent=0
    _
  %s9 = ssub.s32 1, %s7
  %s10 = scalar_select 0, %s9, %s7
  $region1: #{res_block_forward.1} parent=0
    #allocation2 [shape = 'u8[8192]{0}', space=vmem, size = 0x2000, scoped, tag = 'output window, operand 0, single buffered']
    #allocation3 [shape = 's32[1]{0}', space=sflag, size = 0x4, scoped, tag = 'scoped memory for res_block_forward.1']
    %11 = vsyncpa [#allocation3], 0
    // Predicated region
    $region2: #{res_block_forward.1} parent=1 // pred_check
      _
    $region3: #{res_block_forward.1} parent=1 // pred_check_branch
      %13 = sbr.rel (0) target = $region5
    $region4: #{res_block_forward.1} parent=1 // pred_region
      _
    $region5: #{res_block_forward.1} parent=1 // pred_fallthru
      _
    // Predicated region
    $region6: #{res_block_forward.1} parent=1 // pred_check
      _
    $region7: #{res_block_forward.1} parent=1 // pred_check_branch
      %15 = sbr.rel (0) target = $region9
    $region8: #{res_block_forward.1} parent=1 // pred_region
      _
    $region9: #{res_block_forward.1} parent=1 // pred_fallthru
      _
    // Predicated region
    $region10: #{res_block_forward.1} parent=1 // pred_check
      _
    $region11: #{res_block_forward.1} parent=1 // pred_check_branch
      %17 = sbr.rel (0) target = $region13
    $region12: #{res_block_forward.1} parent=1 // pred_region
      _
    $region13: #{res_block_forward.1} parent=1 // pred_fallthru
      _
    // Predicated region
    $region14: #{res_block_forward.1} parent=1 // pred_check
      _
    $region15: #{res_block_forward.1} parent=1 // pred_check_branch
      %19 = sbr.rel (0) target = $region17
    $region16: #{res_block_forward.1} parent=1 // pred_region
      _
    $region17: #{res_block_forward.1} parent=1 // pred_fallthru
      _
    // Predicated region
    $region18: #{res_block_forward.1} parent=1 // pred_check
      _
    $region19: #{res_block_forward.1} parent=1 // pred_check_branch
      %21 = sbr.rel (0) target = $region21
    $region20: #{res_block_forward.1} parent=1 // pred_region
      _
    $region21: #{res_block_forward.1} parent=1 // pred_fallthru
      _
    // Predicated region
    $region22: #{res_block_forward.1} parent=1 // pred_check
      _
    $region23: #{res_block_forward.1} parent=1 // pred_check_branch
      %23 = sbr.rel (0) target = $region25
    $region24: #{res_block_forward.1} parent=1 // pred_region
      _
    $region25: #{res_block_forward.1} parent=1 // pred_fallthru
      _
    %v24 = vld [vmem:[%s0] sm:$0xf]
    %v26 = vunpack.c.l.s4 1983009808
    %v27 = vunpack.c.0.s8 %v26
    %v28 = vlaneseq
    %v29 = vshrl.u32 %v28, 7
    %v30 = vsub.s32 %v27, %v29
    %v31 = vrot.slane %v24, %v30
    %v32 = vld [vmem:[%s0 + $0x4] sm:$0xf]
    %v34 = vunpack.c.l.s4 1983009808
    %v35 = vunpack.c.0.s8 %v34
    %v36 = vlaneseq
    %v37 = vshrl.u32 %v36, 7
    %v38 = vsub.s32 %v35, %v37
    %v39 = vrot.slane %v32, %v38
    %v40 = vcombine.low %v31, %v39
    %v41 = vcombine.high %v31, %v39
    %v43 = vunpack.c.l.s4 1934713408
    %v44 = vunpack.c.0.s8 %v43
    %v45 = vlaneseq
    %v46 = vshrl.u32 %v45, 7
    %v47 = vsub.s32 %v44, %v46
    %v48 = vrot.slane %v40, %v47
    %v50 = vunpack.c.l.s4 1934713408
    %v51 = vunpack.c.0.s8 %v50
    %v52 = vlaneseq
    %v53 = vshrl.u32 %v52, 7
    %v54 = vsub.s32 %v51, %v53
    %v55 = vrot.slane %v41, %v54
    %v56 = vcombine.high %v48, 0.0
    %v57 = vcombine.high %v55, 0.0
    %62 = vrot.lane.b32.xlu0 %v48, 3
    %v63 = vpop.permute.xlu0 %62
    %64 = vrot.lane.b32.xlu0 %v56, 3
    %v65 = vpop.permute.xlu0 %64
    %66 = vrot.lane.b32.xlu0 %v55, 3
    %v67 = vpop.permute.xlu0 %66
    %68 = vrot.lane.b32.xlu0 %v57, 3
    %v69 = vpop.permute.xlu0 %68
    %vm74 = vcmask 23552
    %v75 = vsel %vm74, 0.0, %v63
    %v76 = vsel %vm74, 0.0, %v65
    %v77 = vsel %vm74, 0.0, %v67
    %v78 = vsel %vm74, 0.0, %v69
    %vm79 = vcmask 154624
    %v80 = vsel %vm79, %v75, 0.0
    %v81 = vsel %vm79, %v76, 0.0
    %v82 = vsel %vm79, %v77, 0.0
    %v83 = vsel %vm79, %v78, 0.0
    %v84 = vcombine.low %v80, %v82
    %v86 = vunpack.c.l.s4 1983009808
    %v87 = vunpack.c.0.s8 %v86
    %v88 = vlaneseq
    %v89 = vshrl.u32 %v88, 7
    %v90 = vsub.s32 %v87, %v89
    %v91 = vrot.slane %v84, %v90
    %v92 = vcombine.low %v81, %v83
    %v94 = vunpack.c.l.s4 1983009808
    %v95 = vunpack.c.0.s8 %v94
    %v96 = vlaneseq
    %v97 = vshrl.u32 %v96, 7
    %v98 = vsub.s32 %v95, %v97
    %v99 = vrot.slane %v92, %v98
    %v100 = vcombine.low %v91, %v99
    %v102 = vunpack.c.l.s4 1934713408
    %v103 = vunpack.c.0.s8 %v102
    %v104 = vlaneseq
    %v105 = vshrl.u32 %v104, 7
    %v106 = vsub.s32 %v103, %v105
    %v107 = vrot.slane %v100, %v106
    %v108 = vcombine.high %v107, 0.0
    %110 = vrot.lane.b32.xlu0 %v108, 16
    %v111 = vpop.permute.xlu0 %110
    %vm113 = vcmask 130048
    %v114 = vsel %vm113, %v107, %v111
    %v115 = vld [vmem:[%s1] sm:$0xff]
    %120 = vrot.lane.b32.xlu0 %v80, 127
    %v121 = vpop.permute.xlu0 %120
    %122 = vrot.lane.b32.xlu0 %v81, 127
    %v123 = vpop.permute.xlu0 %122
    %124 = vrot.lane.b32.xlu0 %v82, 127
    %v125 = vpop.permute.xlu0 %124
    %126 = vrot.lane.b32.xlu0 %v83, 127
    %v127 = vpop.permute.xlu0 %126
    %v132 = vcombine.low %v121, %v125
    %v134 = vunpack.c.l.s4 1983009808
    %v135 = vunpack.c.0.s8 %v134
    %v136 = vlaneseq
    %v137 = vshrl.u32 %v136, 7
    %v138 = vsub.s32 %v135, %v137
    %v139 = vrot.slane %v132, %v138
    %v140 = vcombine.low %v123, %v127
    %v142 = vunpack.c.l.s4 1983009808
    %v143 = vunpack.c.0.s8 %v142
    %v144 = vlaneseq
    %v145 = vshrl.u32 %v144, 7
    %v146 = vsub.s32 %v143, %v145
    %v147 = vrot.slane %v140, %v146
    %v148 = vcombine.low %v139, %v147
    %v150 = vunpack.c.l.s4 1934713408
    %v151 = vunpack.c.0.s8 %v150
    %v152 = vlaneseq
    %v153 = vshrl.u32 %v152, 7
    %v154 = vsub.s32 %v151, %v153
    %v155 = vrot.slane %v148, %v154
    %v156 = vcombine.high %v155, 0.0
    %158 = vrot.lane.b32.xlu0 %v156, 16
    %v159 = vpop.permute.xlu0 %158
    %v161 = vsel %vm113, %v155, %v159
    %163 = vrot.lane.b32.xlu0 %v115, 124
    %v164 = vpop.permute.xlu0 %163
    %vm165 = vcmask 31744
    %v166 = vsel %vm165, %v164, 0
    %vm168 = vcmask 1043456
    %v170 = vsel %vm168, %v161, 0
    %172 = vmatprep.subr.mxu0 0.0
    %173 = vmatpush1.msra.mxu0 %v170
    %174 = vmatprep.subr.mxu0 0.0
    %175 = vmatpush1.msra.mxu0 0.0
    %176 = vmatprep.subr.mxu0 0.0
    %177 = vmatpush1.msra.mxu0 0.0
    %178 = vmatprep.subr.mxu0 0.0
    %179 = vmatpush1.msra.mxu0 0.0
    %180 = vmatprep.subr.mxu0 0.0
    %181 = vmatpush1.msra.mxu0 0.0
    %182 = vmatprep.subr.mxu0 0.0
    %183 = vmatpush1.msra.mxu0 0.0
    %184 = vmatprep.subr.mxu0 0.0
    %185 = vmatpush1.msra.mxu0 0.0
    %186 = vmatprep.subr.mxu0 0.0
    %187 = vmatpush1.msra.mxu0 0.0
    %188 = vmatprep.subr.mxu0 0.0
    %189 = vmatpush1.msra.mxu0 0.0
    %190 = vmatprep.subr.mxu0 0.0
    %191 = vmatpush1.msra.mxu0 0.0
    %192 = vmatprep.subr.mxu0 0.0
    %193 = vmatpush1.msra.mxu0 0.0
    %194 = vmatprep.subr.mxu0 0.0
    %195 = vmatpush1.msra.mxu0 0.0
    %196 = vmatprep.subr.mxu0 0.0
    %197 = vmatpush1.msra.mxu0 0.0
    %198 = vmatprep.subr.mxu0 0.0
    %199 = vmatpush1.msra.mxu0 0.0
    %200 = vmatprep.subr.mxu0 0.0
    %201 = vmatpush1.msra.mxu0 0.0
    %202 = vmatprep.subr.mxu0 0.0
    %203 = vmatpush1.msra.mxu0 0.0
    %204 = vmatprep.subr.mxu0 0.0
    %205 = vmatpush1.msra.mxu0 0.0
    %206 = vmatprep.subr.mxu0 0.0
    %207 = vmatpush1.msra.mxu0 0.0
    %208 = vmatprep.subr.mxu0 0.0
    %209 = vmatpush1.msra.mxu0 0.0
    %210 = vmatprep.subr.mxu0 0.0
    %211 = vmatpush1.msra.mxu0 0.0
    %212 = vmatprep.subr.mxu0 0.0
    %213 = vmatpush1.msra.mxu0 0.0
    %214 = vmatprep.subr.mxu0 0.0
    %215 = vmatpush1.msra.mxu0 0.0
    %216 = vmatprep.subr.mxu0 0.0
    %217 = vmatpush1.msra.mxu0 0.0
    %218 = vmatprep.subr.mxu0 0.0
    %219 = vmatpush1.msra.mxu0 0.0
    %220 = vmatprep.subr.mxu0 0.0
    %221 = vmatpush1.msra.mxu0 0.0
    %222 = vmatprep.subr.mxu0 0.0
    %223 = vmatpush1.msra.mxu0 0.0
    %224 = vmatprep.subr.mxu0 0.0
    %225 = vmatpush1.msra.mxu0 0.0
    %226 = vmatprep.subr.mxu0 0.0
    %227 = vmatpush1.msra.mxu0 0.0
    %228 = vmatprep.subr.mxu0 0.0
    %229 = vmatpush1.msra.mxu0 0.0
    %230 = vmatprep.subr.mxu0 0.0
    %231 = vmatpush1.msra.mxu0 0.0
    %232 = vmatprep.subr.mxu0 0.0
    %233 = vmatpush1.msra.mxu0 0.0
    %234 = vmatprep.subr.mxu0 0.0
    %235 = vmatpush1.msra.mxu0 0.0
    %236 = vmatprep.mubr.f32.mxu0 0.0
    %237 = vmatmul.mubr.f32.gmra.mrb[0].mxu0 %v166
    %v238 = vpop.f32.mrb[0].mxu0
    %v239 = vadd.f32 0.0, %v238
    %v240 = vpop.f32.mrb[0].mxu0
    %241 = vdwg.mxu0
    %v242 = vsel %vm165, %v115, 0
    %v245 = vsel %vm168, %v114, 0
    %247 = vmatprep.subr.mxu0 0.0
    %248 = vmatpush1.msra.mxu0 %v245
    %249 = vmatprep.subr.mxu0 0.0
    %250 = vmatpush1.msra.mxu0 0.0
    %251 = vmatprep.subr.mxu0 0.0
    %252 = vmatpush1.msra.mxu0 0.0
    %253 = vmatprep.subr.mxu0 0.0
    %254 = vmatpush1.msra.mxu0 0.0
    %255 = vmatprep.subr.mxu0 0.0
    %256 = vmatpush1.msra.mxu0 0.0
    %257 = vmatprep.subr.mxu0 0.0
    %258 = vmatpush1.msra.mxu0 0.0
    %259 = vmatprep.subr.mxu0 0.0
    %260 = vmatpush1.msra.mxu0 0.0
    %261 = vmatprep.subr.mxu0 0.0
    %262 = vmatpush1.msra.mxu0 0.0
    %263 = vmatprep.subr.mxu0 0.0
    %264 = vmatpush1.msra.mxu0 0.0
    %265 = vmatprep.subr.mxu0 0.0
    %266 = vmatpush1.msra.mxu0 0.0
    %267 = vmatprep.subr.mxu0 0.0
    %268 = vmatpush1.msra.mxu0 0.0
    %269 = vmatprep.subr.mxu0 0.0
    %270 = vmatpush1.msra.mxu0 0.0
    %271 = vmatprep.subr.mxu0 0.0
    %272 = vmatpush1.msra.mxu0 0.0
    %273 = vmatprep.subr.mxu0 0.0
    %274 = vmatpush1.msra.mxu0 0.0
    %275 = vmatprep.subr.mxu0 0.0
    %276 = vmatpush1.msra.mxu0 0.0
    %277 = vmatprep.subr.mxu0 0.0
    %278 = vmatpush1.msra.mxu0 0.0
    %279 = vmatprep.subr.mxu0 0.0
    %280 = vmatpush1.msra.mxu0 0.0
    %281 = vmatprep.subr.mxu0 0.0
    %282 = vmatpush1.msra.mxu0 0.0
    %283 = vmatprep.subr.mxu0 0.0
    %284 = vmatpush1.msra.mxu0 0.0
    %285 = vmatprep.subr.mxu0 0.0
    %286 = vmatpush1.msra.mxu0 0.0
    %287 = vmatprep.subr.mxu0 0.0
    %288 = vmatpush1.msra.mxu0 0.0
    %289 = vmatprep.subr.mxu0 0.0
    %290 = vmatpush1.msra.mxu0 0.0
    %291 = vmatprep.subr.mxu0 0.0
    %292 = vmatpush1.msra.mxu0 0.0
    %293 = vmatprep.subr.mxu0 0.0
    %294 = vmatpush1.msra.mxu0 0.0
    %295 = vmatprep.subr.mxu0 0.0
    %296 = vmatpush1.msra.mxu0 0.0
    %297 = vmatprep.subr.mxu0 0.0
    %298 = vmatpush1.msra.mxu0 0.0
    %299 = vmatprep.subr.mxu0 0.0
    %300 = vmatpush1.msra.mxu0 0.0
    %301 = vmatprep.subr.mxu0 0.0
    %302 = vmatpush1.msra.mxu0 0.0
    %303 = vmatprep.subr.mxu0 0.0
    %304 = vmatpush1.msra.mxu0 0.0
    %305 = vmatprep.subr.mxu0 0.0
    %306 = vmatpush1.msra.mxu0 0.0
    %307 = vmatprep.subr.mxu0 0.0
    %308 = vmatpush1.msra.mxu0 0.0
    %309 = vmatprep.subr.mxu0 0.0
    %310 = vmatpush1.msra.mxu0 0.0
    %311 = vmatprep.mubr.f32.mxu0 0.0
    %312 = vmatmul.mubr.f32.gmra.mrb[0].mxu0 %v242
    %v313 = vpop.f32.mrb[0].mxu0
    %v314 = vadd.f32 %v239, %v313
    %v315 = vpop.f32.mrb[0].mxu0
    %316 = vdwg.mxu0
    %317 = vrot.lane.b32.xlu0 %v80, 126
    %v318 = vpop.permute.xlu0 %317
    %319 = vrot.lane.b32.xlu0 %v81, 126
    %v320 = vpop.permute.xlu0 %319
    %321 = vrot.lane.b32.xlu0 %v82, 126
    %v322 = vpop.permute.xlu0 %321
    %323 = vrot.lane.b32.xlu0 %v83, 126
    %v324 = vpop.permute.xlu0 %323
    %v329 = vcombine.low %v318, %v322
    %v331 = vunpack.c.l.s4 1983009808
    %v332 = vunpack.c.0.s8 %v331
    %v333 = vlaneseq
    %v334 = vshrl.u32 %v333, 7
    %v335 = vsub.s32 %v332, %v334
    %v336 = vrot.slane %v329, %v335
    %v337 = vcombine.low %v320, %v324
    %v339 = vunpack.c.l.s4 1983009808
    %v340 = vunpack.c.0.s8 %v339
    %v341 = vlaneseq
    %v342 = vshrl.u32 %v341, 7
    %v343 = vsub.s32 %v340, %v342
    %v344 = vrot.slane %v337, %v343
    %v345 = vcombine.low %v336, %v344
    %v347 = vunpack.c.l.s4 1934713408
    %v348 = vunpack.c.0.s8 %v347
    %v349 = vlaneseq
    %v350 = vshrl.u32 %v349, 7
    %v351 = vsub.s32 %v348, %v350
    %v352 = vrot.slane %v345, %v351
    %v353 = vcombine.high %v352, 0.0
    %355 = vrot.lane.b32.xlu0 %v353, 16
    %v356 = vpop.permute.xlu0 %355
    %v358 = vsel %vm113, %v352, %v356
    %v359 = vld [vmem:[%s1] sm:$0xff]
    %361 = vrot.lane.b32.xlu0 %v359, 120
    %v362 = vpop.permute.xlu0 %361
    %v363 = vsel %vm165, %v362, 0
    %v366 = vsel %vm168, %v358, 0
    %368 = vmatprep.subr.mxu0 0.0
    %369 = vmatpush1.msra.mxu0 %v366
    %370 = vmatprep.subr.mxu0 0.0
    %371 = vmatpush1.msra.mxu0 0.0
    %372 = vmatprep.subr.mxu0 0.0
    %373 = vmatpush1.msra.mxu0 0.0
    %374 = vmatprep.subr.mxu0 0.0
    %375 = vmatpush1.msra.mxu0 0.0
    %376 = vmatprep.subr.mxu0 0.0
    %377 = vmatpush1.msra.mxu0 0.0
    %378 = vmatprep.subr.mxu0 0.0
    %379 = vmatpush1.msra.mxu0 0.0
    %380 = vmatprep.subr.mxu0 0.0
    %381 = vmatpush1.msra.mxu0 0.0
    %382 = vmatprep.subr.mxu0 0.0
    %383 = vmatpush1.msra.mxu0 0.0
    %384 = vmatprep.subr.mxu0 0.0
    %385 = vmatpush1.msra.mxu0 0.0
    %386 = vmatprep.subr.mxu0 0.0
    %387 = vmatpush1.msra.mxu0 0.0
    %388 = vmatprep.subr.mxu0 0.0
    %389 = vmatpush1.msra.mxu0 0.0
    %390 = vmatprep.subr.mxu0 0.0
    %391 = vmatpush1.msra.mxu0 0.0
    %392 = vmatprep.subr.mxu0 0.0
    %393 = vmatpush1.msra.mxu0 0.0
    %394 = vmatprep.subr.mxu0 0.0
    %395 = vmatpush1.msra.mxu0 0.0
    %396 = vmatprep.subr.mxu0 0.0
    %397 = vmatpush1.msra.mxu0 0.0
    %398 = vmatprep.subr.mxu0 0.0
    %399 = vmatpush1.msra.mxu0 0.0
    %400 = vmatprep.subr.mxu0 0.0
    %401 = vmatpush1.msra.mxu0 0.0
    %402 = vmatprep.subr.mxu0 0.0
    %403 = vmatpush1.msra.mxu0 0.0
    %404 = vmatprep.subr.mxu0 0.0
    %405 = vmatpush1.msra.mxu0 0.0
    %406 = vmatprep.subr.mxu0 0.0
    %407 = vmatpush1.msra.mxu0 0.0
    %408 = vmatprep.subr.mxu0 0.0
    %409 = vmatpush1.msra.mxu0 0.0
    %410 = vmatprep.subr.mxu0 0.0
    %411 = vmatpush1.msra.mxu0 0.0
    %412 = vmatprep.subr.mxu0 0.0
    %413 = vmatpush1.msra.mxu0 0.0
    %414 = vmatprep.subr.mxu0 0.0
    %415 = vmatpush1.msra.mxu0 0.0
    %416 = vmatprep.subr.mxu0 0.0
    %417 = vmatpush1.msra.mxu0 0.0
    %418 = vmatprep.subr.mxu0 0.0
    %419 = vmatpush1.msra.mxu0 0.0
    %420 = vmatprep.subr.mxu0 0.0
    %421 = vmatpush1.msra.mxu0 0.0
    %422 = vmatprep.subr.mxu0 0.0
    %423 = vmatpush1.msra.mxu0 0.0
    %424 = vmatprep.subr.mxu0 0.0
    %425 = vmatpush1.msra.mxu0 0.0
    %426 = vmatprep.subr.mxu0 0.0
    %427 = vmatpush1.msra.mxu0 0.0
    %428 = vmatprep.subr.mxu0 0.0
    %429 = vmatpush1.msra.mxu0 0.0
    %430 = vmatprep.subr.mxu0 0.0
    %431 = vmatpush1.msra.mxu0 0.0
    %432 = vmatprep.mubr.f32.mxu0 0.0
    %433 = vmatmul.mubr.f32.gmra.mrb[0].mxu0 %v363
    %v434 = vpop.f32.mrb[0].mxu0
    %v435 = vadd.f32 0.0, %v434
    %v436 = vpop.f32.mrb[0].mxu0
    %437 = vdwg.mxu0
    %v438 = vadd.f32 %v314, %v435
    %439 = vrot.lane.b32.xlu0 %v80, 125
    %v440 = vpop.permute.xlu0 %439
    %441 = vrot.lane.b32.xlu0 %v81, 125
    %v442 = vpop.permute.xlu0 %441
    %443 = vrot.lane.b32.xlu0 %v82, 125
    %v444 = vpop.permute.xlu0 %443
    %445 = vrot.lane.b32.xlu0 %v83, 125
    %v446 = vpop.permute.xlu0 %445
    %v451 = vcombine.low %v440, %v444
    %v453 = vunpack.c.l.s4 1983009808
    %v454 = vunpack.c.0.s8 %v453
    %v455 = vlaneseq
    %v456 = vshrl.u32 %v455, 7
    %v457 = vsub.s32 %v454, %v456
    %v458 = vrot.slane %v451, %v457
    %v459 = vcombine.low %v442, %v446
    %v461 = vunpack.c.l.s4 1983009808
    %v462 = vunpack.c.0.s8 %v461
    %v463 = vlaneseq
    %v464 = vshrl.u32 %v463, 7
    %v465 = vsub.s32 %v462, %v464
    %v466 = vrot.slane %v459, %v465
    %v467 = vcombine.low %v458, %v466
    %v469 = vunpack.c.l.s4 1934713408
    %v470 = vunpack.c.0.s8 %v469
    %v471 = vlaneseq
    %v472 = vshrl.u32 %v471, 7
    %v473 = vsub.s32 %v470, %v472
    %v474 = vrot.slane %v467, %v473
    %v475 = vcombine.high %v474, 0.0
    %477 = vrot.lane.b32.xlu0 %v475, 16
    %v478 = vpop.permute.xlu0 %477
    %v480 = vsel %vm113, %v474, %v478
    %v481 = vld [vmem:[%s1] sm:$0xff]
    %483 = vrot.lane.b32.xlu0 %v481, 116
    %v484 = vpop.permute.xlu0 %483
    %v485 = vsel %vm165, %v484, 0
    %v488 = vsel %vm168, %v480, 0
    %490 = vmatprep.subr.mxu0 0.0
    %491 = vmatpush1.msra.mxu0 %v488
    %492 = vmatprep.subr.mxu0 0.0
    %493 = vmatpush1.msra.mxu0 0.0
    %494 = vmatprep.subr.mxu0 0.0
    %495 = vmatpush1.msra.mxu0 0.0
    %496 = vmatprep.subr.mxu0 0.0
    %497 = vmatpush1.msra.mxu0 0.0
    %498 = vmatprep.subr.mxu0 0.0
    %499 = vmatpush1.msra.mxu0 0.0
    %500 = vmatprep.subr.mxu0 0.0
    %501 = vmatpush1.msra.mxu0 0.0
    %502 = vmatprep.subr.mxu0 0.0
    %503 = vmatpush1.msra.mxu0 0.0
    %504 = vmatprep.subr.mxu0 0.0
    %505 = vmatpush1.msra.mxu0 0.0
    %506 = vmatprep.subr.mxu0 0.0
    %507 = vmatpush1.msra.mxu0 0.0
    %508 = vmatprep.subr.mxu0 0.0
    %509 = vmatpush1.msra.mxu0 0.0
    %510 = vmatprep.subr.mxu0 0.0
    %511 = vmatpush1.msra.mxu0 0.0
    %512 = vmatprep.subr.mxu0 0.0
    %513 = vmatpush1.msra.mxu0 0.0
    %514 = vmatprep.subr.mxu0 0.0
    %515 = vmatpush1.msra.mxu0 0.0
    %516 = vmatprep.subr.mxu0 0.0
    %517 = vmatpush1.msra.mxu0 0.0
    %518 = vmatprep.subr.mxu0 0.0
    %519 = vmatpush1.msra.mxu0 0.0
    %520 = vmatprep.subr.mxu0 0.0
    %521 = vmatpush1.msra.mxu0 0.0
    %522 = vmatprep.subr.mxu0 0.0
    %523 = vmatpush1.msra.mxu0 0.0
    %524 = vmatprep.subr.mxu0 0.0
    %525 = vmatpush1.msra.mxu0 0.0
    %526 = vmatprep.subr.mxu0 0.0
    %527 = vmatpush1.msra.mxu0 0.0
    %528 = vmatprep.subr.mxu0 0.0
    %529 = vmatpush1.msra.mxu0 0.0
    %530 = vmatprep.subr.mxu0 0.0
    %531 = vmatpush1.msra.mxu0 0.0
    %532 = vmatprep.subr.mxu0 0.0
    %533 = vmatpush1.msra.mxu0 0.0
    %534 = vmatprep.subr.mxu0 0.0
    %535 = vmatpush1.msra.mxu0 0.0
    %536 = vmatprep.subr.mxu0 0.0
    %537 = vmatpush1.msra.mxu0 0.0
    %538 = vmatprep.subr.mxu0 0.0
    %539 = vmatpush1.msra.mxu0 0.0
    %540 = vmatprep.subr.mxu0 0.0
    %541 = vmatpush1.msra.mxu0 0.0
    %542 = vmatprep.subr.mxu0 0.0
    %543 = vmatpush1.msra.mxu0 0.0
    %544 = vmatprep.subr.mxu0 0.0
    %545 = vmatpush1.msra.mxu0 0.0
    %546 = vmatprep.subr.mxu0 0.0
    %547 = vmatpush1.msra.mxu0 0.0
    %548 = vmatprep.subr.mxu0 0.0
    %549 = vmatpush1.msra.mxu0 0.0
    %550 = vmatprep.subr.mxu0 0.0
    %551 = vmatpush1.msra.mxu0 0.0
    %552 = vmatprep.subr.mxu0 0.0
    %553 = vmatpush1.msra.mxu0 0.0
    %554 = vmatprep.mubr.f32.mxu0 0.0
    %555 = vmatmul.mubr.f32.gmra.mrb[0].mxu0 %v485
    %v556 = vpop.f32.mrb[0].mxu0
    %v557 = vadd.f32 0.0, %v556
    %v558 = vpop.f32.mrb[0].mxu0
    %559 = vdwg.mxu0
    %v560 = vadd.f32 %v438, %v557
    %561 = vrot.lane.b32.xlu0 %v80, 124
    %v562 = vpop.permute.xlu0 %561
    %563 = vrot.lane.b32.xlu0 %v81, 124
    %v564 = vpop.permute.xlu0 %563
    %565 = vrot.lane.b32.xlu0 %v82, 124
    %v566 = vpop.permute.xlu0 %565
    %567 = vrot.lane.b32.xlu0 %v83, 124
    %v568 = vpop.permute.xlu0 %567
    %v573 = vcombine.low %v562, %v566
    %v575 = vunpack.c.l.s4 1983009808
    %v576 = vunpack.c.0.s8 %v575
    %v577 = vlaneseq
    %v578 = vshrl.u32 %v577, 7
    %v579 = vsub.s32 %v576, %v578
    %v580 = vrot.slane %v573, %v579
    %v581 = vcombine.low %v564, %v568
    %v583 = vunpack.c.l.s4 1983009808
    %v584 = vunpack.c.0.s8 %v583
    %v585 = vlaneseq
    %v586 = vshrl.u32 %v585, 7
    %v587 = vsub.s32 %v584, %v586
    %v588 = vrot.slane %v581, %v587
    %v589 = vcombine.low %v580, %v588
    %v591 = vunpack.c.l.s4 1934713408
    %v592 = vunpack.c.0.s8 %v591
    %v593 = vlaneseq
    %v594 = vshrl.u32 %v593, 7
    %v595 = vsub.s32 %v592, %v594
    %v596 = vrot.slane %v589, %v595
    %v597 = vcombine.high %v596, 0.0
    %599 = vrot.lane.b32.xlu0 %v597, 16
    %v600 = vpop.permute.xlu0 %599
    %v602 = vsel %vm113, %v596, %v600
    %v603 = vld [vmem:[%s1] sm:$0xff]
    %605 = vrot.lane.b32.xlu0 %v603, 112
    %v606 = vpop.permute.xlu0 %605
    %v607 = vsel %vm165, %v606, 0
    %v610 = vsel %vm168, %v602, 0
    %612 = vmatprep.subr.mxu0 0.0
    %613 = vmatpush1.msra.mxu0 %v610
    %614 = vmatprep.subr.mxu0 0.0
    %615 = vmatpush1.msra.mxu0 0.0
    %616 = vmatprep.subr.mxu0 0.0
    %617 = vmatpush1.msra.mxu0 0.0
    %618 = vmatprep.subr.mxu0 0.0
    %619 = vmatpush1.msra.mxu0 0.0
    %620 = vmatprep.subr.mxu0 0.0
    %621 = vmatpush1.msra.mxu0 0.0
    %622 = vmatprep.subr.mxu0 0.0
    %623 = vmatpush1.msra.mxu0 0.0
    %624 = vmatprep.subr.mxu0 0.0
    %625 = vmatpush1.msra.mxu0 0.0
    %626 = vmatprep.subr.mxu0 0.0
    %627 = vmatpush1.msra.mxu0 0.0
    %628 = vmatprep.subr.mxu0 0.0
    %629 = vmatpush1.msra.mxu0 0.0
    %630 = vmatprep.subr.mxu0 0.0
    %631 = vmatpush1.msra.mxu0 0.0
    %632 = vmatprep.subr.mxu0 0.0
    %633 = vmatpush1.msra.mxu0 0.0
    %634 = vmatprep.subr.mxu0 0.0
    %635 = vmatpush1.msra.mxu0 0.0
    %636 = vmatprep.subr.mxu0 0.0
    %637 = vmatpush1.msra.mxu0 0.0
    %638 = vmatprep.subr.mxu0 0.0
    %639 = vmatpush1.msra.mxu0 0.0
    %640 = vmatprep.subr.mxu0 0.0
    %641 = vmatpush1.msra.mxu0 0.0
    %642 = vmatprep.subr.mxu0 0.0
    %643 = vmatpush1.msra.mxu0 0.0
    %644 = vmatprep.subr.mxu0 0.0
    %645 = vmatpush1.msra.mxu0 0.0
    %646 = vmatprep.subr.mxu0 0.0
    %647 = vmatpush1.msra.mxu0 0.0
    %648 = vmatprep.subr.mxu0 0.0
    %649 = vmatpush1.msra.mxu0 0.0
    %650 = vmatprep.subr.mxu0 0.0
    %651 = vmatpush1.msra.mxu0 0.0
    %652 = vmatprep.subr.mxu0 0.0
    %653 = vmatpush1.msra.mxu0 0.0
    %654 = vmatprep.subr.mxu0 0.0
    %655 = vmatpush1.msra.mxu0 0.0
    %656 = vmatprep.subr.mxu0 0.0
    %657 = vmatpush1.msra.mxu0 0.0
    %658 = vmatprep.subr.mxu0 0.0
    %659 = vmatpush1.msra.mxu0 0.0
    %660 = vmatprep.subr.mxu0 0.0
    %661 = vmatpush1.msra.mxu0 0.0
    %662 = vmatprep.subr.mxu0 0.0
    %663 = vmatpush1.msra.mxu0 0.0
    %664 = vmatprep.subr.mxu0 0.0
    %665 = vmatpush1.msra.mxu0 0.0
    %666 = vmatprep.subr.mxu0 0.0
    %667 = vmatpush1.msra.mxu0 0.0
    %668 = vmatprep.subr.mxu0 0.0
    %669 = vmatpush1.msra.mxu0 0.0
    %670 = vmatprep.subr.mxu0 0.0
    %671 = vmatpush1.msra.mxu0 0.0
    %672 = vmatprep.subr.mxu0 0.0
    %673 = vmatpush1.msra.mxu0 0.0
    %674 = vmatprep.subr.mxu0 0.0
    %675 = vmatpush1.msra.mxu0 0.0
    %676 = vmatprep.mubr.f32.mxu0 0.0
    %677 = vmatmul.mubr.f32.gmra.mrb[0].mxu0 %v607
    %v678 = vpop.f32.mrb[0].mxu0
    %v679 = vadd.f32 0.0, %v678
    %v680 = vpop.f32.mrb[0].mxu0
    %681 = vdwg.mxu0
    %v682 = vadd.f32 %v560, %v679
    %683 = vrot.lane.b32.xlu0 %v80, 123
    %v684 = vpop.permute.xlu0 %683
    %685 = vrot.lane.b32.xlu0 %v81, 123
    %v686 = vpop.permute.xlu0 %685
    %687 = vrot.lane.b32.xlu0 %v82, 123
    %v688 = vpop.permute.xlu0 %687
    %689 = vrot.lane.b32.xlu0 %v83, 123
    %v690 = vpop.permute.xlu0 %689
    %v695 = vcombine.low %v684, %v688
    %v697 = vunpack.c.l.s4 1983009808
    %v698 = vunpack.c.0.s8 %v697
    %v699 = vlaneseq
    %v700 = vshrl.u32 %v699, 7
    %v701 = vsub.s32 %v698, %v700
    %v702 = vrot.slane %v695, %v701
    %v703 = vcombine.low %v686, %v690
    %v705 = vunpack.c.l.s4 1983009808
    %v706 = vunpack.c.0.s8 %v705
    %v707 = vlaneseq
    %v708 = vshrl.u32 %v707, 7
    %v709 = vsub.s32 %v706, %v708
    %v710 = vrot.slane %v703, %v709
    %v711 = vcombine.low %v702, %v710
    %v713 = vunpack.c.l.s4 1934713408
    %v714 = vunpack.c.0.s8 %v713
    %v715 = vlaneseq
    %v716 = vshrl.u32 %v715, 7
    %v717 = vsub.s32 %v714, %v716
    %v718 = vrot.slane %v711, %v717
    %v719 = vcombine.high %v718, 0.0
    %721 = vrot.lane.b32.xlu0 %v719, 16
    %v722 = vpop.permute.xlu0 %721
    %v724 = vsel %vm113, %v718, %v722
    %v725 = vld [vmem:[%s1] sm:$0xff]
    %727 = vrot.lane.b32.xlu0 %v725, 108
    %v728 = vpop.permute.xlu0 %727
    %v729 = vsel %vm165, %v728, 0
    %v732 = vsel %vm168, %v724, 0
    %734 = vmatprep.subr.mxu0 0.0
    %735 = vmatpush1.msra.mxu0 %v732
    %736 = vmatprep.subr.mxu0 0.0
    %737 = vmatpush1.msra.mxu0 0.0
    %738 = vmatprep.subr.mxu0 0.0
    %739 = vmatpush1.msra.mxu0 0.0
    %740 = vmatprep.subr.mxu0 0.0
    %741 = vmatpush1.msra.mxu0 0.0
    %742 = vmatprep.subr.mxu0 0.0
    %743 = vmatpush1.msra.mxu0 0.0
    %744 = vmatprep.subr.mxu0 0.0
    %745 = vmatpush1.msra.mxu0 0.0
    %746 = vmatprep.subr.mxu0 0.0
    %747 = vmatpush1.msra.mxu0 0.0
    %748 = vmatprep.subr.mxu0 0.0
    %749 = vmatpush1.msra.mxu0 0.0
    %750 = vmatprep.subr.mxu0 0.0
    %751 = vmatpush1.msra.mxu0 0.0
    %752 = vmatprep.subr.mxu0 0.0
    %753 = vmatpush1.msra.mxu0 0.0
    %754 = vmatprep.subr.mxu0 0.0
    %755 = vmatpush1.msra.mxu0 0.0
    %756 = vmatprep.subr.mxu0 0.0
    %757 = vmatpush1.msra.mxu0 0.0
    %758 = vmatprep.subr.mxu0 0.0
    %759 = vmatpush1.msra.mxu0 0.0
    %760 = vmatprep.subr.mxu0 0.0
    %761 = vmatpush1.msra.mxu0 0.0
    %762 = vmatprep.subr.mxu0 0.0
    %763 = vmatpush1.msra.mxu0 0.0
    %764 = vmatprep.subr.mxu0 0.0
    %765 = vmatpush1.msra.mxu0 0.0
    %766 = vmatprep.subr.mxu0 0.0
    %767 = vmatpush1.msra.mxu0 0.0
    %768 = vmatprep.subr.mxu0 0.0
    %769 = vmatpush1.msra.mxu0 0.0
    %770 = vmatprep.subr.mxu0 0.0
    %771 = vmatpush1.msra.mxu0 0.0
    %772 = vmatprep.subr.mxu0 0.0
    %773 = vmatpush1.msra.mxu0 0.0
    %774 = vmatprep.subr.mxu0 0.0
    %775 = vmatpush1.msra.mxu0 0.0
    %776 = vmatprep.subr.mxu0 0.0
    %777 = vmatpush1.msra.mxu0 0.0
    %778 = vmatprep.subr.mxu0 0.0
    %779 = vmatpush1.msra.mxu0 0.0
    %780 = vmatprep.subr.mxu0 0.0
    %781 = vmatpush1.msra.mxu0 0.0
    %782 = vmatprep.subr.mxu0 0.0
    %783 = vmatpush1.msra.mxu0 0.0
    %784 = vmatprep.subr.mxu0 0.0
    %785 = vmatpush1.msra.mxu0 0.0
    %786 = vmatprep.subr.mxu0 0.0
    %787 = vmatpush1.msra.mxu0 0.0
    %788 = vmatprep.subr.mxu0 0.0
    %789 = vmatpush1.msra.mxu0 0.0
    %790 = vmatprep.subr.mxu0 0.0
    %791 = vmatpush1.msra.mxu0 0.0
    %792 = vmatprep.subr.mxu0 0.0
    %793 = vmatpush1.msra.mxu0 0.0
    %794 = vmatprep.subr.mxu0 0.0
    %795 = vmatpush1.msra.mxu0 0.0
    %796 = vmatprep.subr.mxu0 0.0
    %797 = vmatpush1.msra.mxu0 0.0
    %798 = vmatprep.mubr.f32.mxu0 0.0
    %799 = vmatmul.mubr.f32.gmra.mrb[0].mxu0 %v729
    %v800 = vpop.f32.mrb[0].mxu0
    %v801 = vadd.f32 0.0, %v800
    %v802 = vpop.f32.mrb[0].mxu0
    %803 = vdwg.mxu0
    %v804 = vadd.f32 %v682, %v801
    %805 = vrot.lane.b32.xlu0 %v80, 122
    %v806 = vpop.permute.xlu0 %805
    %807 = vrot.lane.b32.xlu0 %v81, 122
    %v808 = vpop.permute.xlu0 %807
    %809 = vrot.lane.b32.xlu0 %v82, 122
    %v810 = vpop.permute.xlu0 %809
    %811 = vrot.lane.b32.xlu0 %v83, 122
    %v812 = vpop.permute.xlu0 %811
    %v817 = vcombine.low %v806, %v810
    %v819 = vunpack.c.l.s4 1983009808
    %v820 = vunpack.c.0.s8 %v819
    %v821 = vlaneseq
    %v822 = vshrl.u32 %v821, 7
    %v823 = vsub.s32 %v820, %v822
    %v824 = vrot.slane %v817, %v823
    %v825 = vcombine.low %v808, %v812
    %v827 = vunpack.c.l.s4 1983009808
    %v828 = vunpack.c.0.s8 %v827
    %v829 = vlaneseq
    %v830 = vshrl.u32 %v829, 7
    %v831 = vsub.s32 %v828, %v830
    %v832 = vrot.slane %v825, %v831
    %v833 = vcombine.low %v824, %v832
    %v835 = vunpack.c.l.s4 1934713408
    %v836 = vunpack.c.0.s8 %v835
    %v837 = vlaneseq
    %v838 = vshrl.u32 %v837, 7
    %v839 = vsub.s32 %v836, %v838
    %v840 = vrot.slane %v833, %v839
    %v841 = vcombine.high %v840, 0.0
    %843 = vrot.lane.b32.xlu0 %v841, 16
    %v844 = vpop.permute.xlu0 %843
    %v846 = vsel %vm113, %v840, %v844
    %v847 = vld [vmem:[%s1] sm:$0xff]
    %849 = vrot.lane.b32.xlu0 %v847, 104
    %v850 = vpop.permute.xlu0 %849
    %v851 = vsel %vm165, %v850, 0
    %v854 = vsel %vm168, %v846, 0
    %856 = vmatprep.subr.mxu0 0.0
    %857 = vmatpush1.msra.mxu0 %v854
    %858 = vmatprep.subr.mxu0 0.0
    %859 = vmatpush1.msra.mxu0 0.0
    %860 = vmatprep.subr.mxu0 0.0
    %861 = vmatpush1.msra.mxu0 0.0
    %862 = vmatprep.subr.mxu0 0.0
    %863 = vmatpush1.msra.mxu0 0.0
    %864 = vmatprep.subr.mxu0 0.0
    %865 = vmatpush1.msra.mxu0 0.0
    %866 = vmatprep.subr.mxu0 0.0
    %867 = vmatpush1.msra.mxu0 0.0
    %868 = vmatprep.subr.mxu0 0.0
    %869 = vmatpush1.msra.mxu0 0.0
    %870 = vmatprep.subr.mxu0 0.0
    %871 = vmatpush1.msra.mxu0 0.0
    %872 = vmatprep.subr.mxu0 0.0
    %873 = vmatpush1.msra.mxu0 0.0
    %874 = vmatprep.subr.mxu0 0.0
    %875 = vmatpush1.msra.mxu0 0.0
    %876 = vmatprep.subr.mxu0 0.0
    %877 = vmatpush1.msra.mxu0 0.0
    %878 = vmatprep.subr.mxu0 0.0
    %879 = vmatpush1.msra.mxu0 0.0
    %880 = vmatprep.subr.mxu0 0.0
    %881 = vmatpush1.msra.mxu0 0.0
    %882 = vmatprep.subr.mxu0 0.0
    %883 = vmatpush1.msra.mxu0 0.0
    %884 = vmatprep.subr.mxu0 0.0
    %885 = vmatpush1.msra.mxu0 0.0
    %886 = vmatprep.subr.mxu0 0.0
    %887 = vmatpush1.msra.mxu0 0.0
    %888 = vmatprep.subr.mxu0 0.0
    %889 = vmatpush1.msra.mxu0 0.0
    %890 = vmatprep.subr.mxu0 0.0
    %891 = vmatpush1.msra.mxu0 0.0
    %892 = vmatprep.subr.mxu0 0.0
    %893 = vmatpush1.msra.mxu0 0.0
    %894 = vmatprep.subr.mxu0 0.0
    %895 = vmatpush1.msra.mxu0 0.0
    %896 = vmatprep.subr.mxu0 0.0
    %897 = vmatpush1.msra.mxu0 0.0
    %898 = vmatprep.subr.mxu0 0.0
    %899 = vmatpush1.msra.mxu0 0.0
    %900 = vmatprep.subr.mxu0 0.0
    %901 = vmatpush1.msra.mxu0 0.0
    %902 = vmatprep.subr.mxu0 0.0
    %903 = vmatpush1.msra.mxu0 0.0
    %904 = vmatprep.subr.mxu0 0.0
    %905 = vmatpush1.msra.mxu0 0.0
    %906 = vmatprep.subr.mxu0 0.0
    %907 = vmatpush1.msra.mxu0 0.0
    %908 = vmatprep.subr.mxu0 0.0
    %909 = vmatpush1.msra.mxu0 0.0
    %910 = vmatprep.subr.mxu0 0.0
    %911 = vmatpush1.msra.mxu0 0.0
    %912 = vmatprep.subr.mxu0 0.0
    %913 = vmatpush1.msra.mxu0 0.0
    %914 = vmatprep.subr.mxu0 0.0
    %915 = vmatpush1.msra.mxu0 0.0
    %916 = vmatprep.subr.mxu0 0.0
    %917 = vmatpush1.msra.mxu0 0.0
    %918 = vmatprep.subr.mxu0 0.0
    %919 = vmatpush1.msra.mxu0 0.0
    %920 = vmatprep.mubr.f32.mxu0 0.0
    %921 = vmatmul.mubr.f32.gmra.mrb[0].mxu0 %v851
    %v922 = vpop.f32.mrb[0].mxu0
    %v923 = vadd.f32 0.0, %v922
    %v924 = vpop.f32.mrb[0].mxu0
    %925 = vdwg.mxu0
    %v926 = vadd.f32 %v804, %v923
    %vm927 = vcmask 261120
    %v928 = vsel %vm927, %v926, 0.0
    %929 = vadd.xlane.f32.xlu0 %v928
    %v930 = vpop.xlane.xlu0 %929
    %v931 = vmul.f32 %v926, %v926
    %v932 = vsel %vm927, %v931, 0.0
    %933 = vadd.xlane.f32.xlu0 %v932
    %v934 = vpop.xlane.xlu0 %933
    %v935 = vmul.f32 %v930, 0.03125
    %v936 = vmul.f32 %v934, 0.03125
    %v937 = vmul.f32 %v935, %v935
    %v938 = vsub.f32 %v936, %v937
    %v939 = vmax.f32 %v938, 0.0
    %v940 = vsub.f32 %v926, %v935
    %v941 = vadd.f32 %v939, 1e-05
    %v942 = vrsqrt.pop %v941
    %v943 = vmul.f32 %v940, %v942
    %v944 = vld [vmem:[%s5] sm:$0xff]
    %946 = vset.pattern.permute.xlu0 0
    %947 = vperm.xlu0 %946, %v944
    %v948 = vpop.permute.xlu0 %947
    %v950 = vmul.f32 %v943, %v948
    %951 = vset.pattern.permute.xlu0 4
    %952 = vperm.xlu0 %951, %v944
    %v953 = vpop.permute.xlu0 %952
    %v955 = vadd.f32 %v950, %v953
    %v956 = vmax.f32 %v955, 0.0
    %958 = vrot.lane.b32.xlu0 %v956, 112
    %v959 = vpop.permute.xlu0 %958
    %v961 = vcombine.high %v956, 0.0
    %v963 = vunpack.c.l.s4 1983009808
    %v964 = vunpack.c.0.s8 %v963
    %v965 = vlaneseq
    %v966 = vshrl.u32 %v965, 7
    %v967 = vsub.s32 %v964, %v966
    %v968 = vrot.slane %v956, %v967
    %v970 = vunpack.c.l.s4 1983009808
    %v971 = vunpack.c.0.s8 %v970
    %v972 = vlaneseq
    %v973 = vshrl.u32 %v972, 7
    %v974 = vsub.s32 %v971, %v973
    %v975 = vrot.slane %v961, %v974
    %v976 = vcombine.high %v959, 0.0
    %v978 = vunpack.c.l.s4 1983009808
    %v979 = vunpack.c.0.s8 %v978
    %v980 = vlaneseq
    %v981 = vshrl.u32 %v980, 7
    %v982 = vsub.s32 %v979, %v981
    %v983 = vrot.slane %v959, %v982
    %v985 = vunpack.c.l.s4 1983009808
    %v986 = vunpack.c.0.s8 %v985
    %v987 = vlaneseq
    %v988 = vshrl.u32 %v987, 7
    %v989 = vsub.s32 %v986, %v988
    %v990 = vrot.slane %v976, %v989
    %v991 = vcombine.low %v968, %v983
    %v992 = vcombine.high %v968, %v983
    %v994 = vunpack.c.l.s4 1934713408
    %v995 = vunpack.c.0.s8 %v994
    %v996 = vlaneseq
    %v997 = vshrl.u32 %v996, 7
    %v998 = vsub.s32 %v995, %v997
    %v999 = vrot.slane %v991, %v998
    %v1001 = vunpack.c.l.s4 1934713408
    %v1002 = vunpack.c.0.s8 %v1001
    %v1003 = vlaneseq
    %v1004 = vshrl.u32 %v1003, 7
    %v1005 = vsub.s32 %v1002, %v1004
    %v1006 = vrot.slane %v992, %v1005
    %v1007 = vcombine.low %v975, %v990
    %v1008 = vcombine.high %v975, %v990
    %v1010 = vunpack.c.l.s4 1934713408
    %v1011 = vunpack.c.0.s8 %v1010
    %v1012 = vlaneseq
    %v1013 = vshrl.u32 %v1012, 7
    %v1014 = vsub.s32 %v1011, %v1013
    %v1015 = vrot.slane %v1007, %v1014
    %v1017 = vunpack.c.l.s4 1934713408
    %v1018 = vunpack.c.0.s8 %v1017
    %v1019 = vlaneseq
    %v1020 = vshrl.u32 %v1019, 7
    %v1021 = vsub.s32 %v1018, %v1020
    %v1022 = vrot.slane %v1008, %v1021
    %v1023 = vcombine.high %v999, 0.0
    %v1024 = vcombine.high %v1006, 0.0
    %v1025 = vcombine.high %v1015, 0.0
    %v1026 = vcombine.high %v1022, 0.0
    %1035 = vrot.lane.b32.xlu0 %v999, 2
    %v1036 = vpop.permute.xlu0 %1035
    %1037 = vrot.lane.b32.xlu0 %v1023, 2
    %v1038 = vpop.permute.xlu0 %1037
    %1039 = vrot.lane.b32.xlu0 %v1006, 2
    %v1040 = vpop.permute.xlu0 %1039
    %1041 = vrot.lane.b32.xlu0 %v1024, 2
    %v1042 = vpop.permute.xlu0 %1041
    %1043 = vrot.lane.b32.xlu0 %v1015, 2
    %v1044 = vpop.permute.xlu0 %1043
    %1045 = vrot.lane.b32.xlu0 %v1025, 2
    %v1046 = vpop.permute.xlu0 %1045
    %1047 = vrot.lane.b32.xlu0 %v1022, 2
    %v1048 = vpop.permute.xlu0 %1047
    %1049 = vrot.lane.b32.xlu0 %v1026, 2
    %v1050 = vpop.permute.xlu0 %1049
    %vm1059 = vcmask 15360
    %v1060 = vsel %vm1059, 0.0, %v1036
    %v1061 = vsel %vm1059, 0.0, %v1038
    %v1062 = vsel %vm1059, 0.0, %v1040
    %v1063 = vsel %vm1059, 0.0, %v1042
    %v1064 = vsel %vm1059, 0.0, %v1044
    %v1065 = vsel %vm1059, 0.0, %v1046
    %v1066 = vsel %vm1059, 0.0, %v1048
    %v1067 = vsel %vm1059, 0.0, %v1050
    %vm1068 = vcmask 146432
    %v1069 = vsel %vm1068, %v1060, 0.0
    %v1070 = vsel %vm1068, %v1061, 0.0
    %v1071 = vsel %vm1068, %v1062, 0.0
    %v1072 = vsel %vm1068, %v1063, 0.0
    %v1073 = vsel %vm1068, %v1064, 0.0
    %v1074 = vsel %vm1068, %v1065, 0.0
    %v1075 = vsel %vm1068, %v1066, 0.0
    %v1076 = vsel %vm1068, %v1067, 0.0
    %v1077 = vcombine.low %v1069, %v1071
    %v1079 = vunpack.c.l.s4 1983009808
    %v1080 = vunpack.c.0.s8 %v1079
    %v1081 = vlaneseq
    %v1082 = vshrl.u32 %v1081, 7
    %v1083 = vsub.s32 %v1080, %v1082
    %v1084 = vrot.slane %v1077, %v1083
    %v1085 = vcombine.low %v1070, %v1072
    %v1087 = vunpack.c.l.s4 1983009808
    %v1088 = vunpack.c.0.s8 %v1087
    %v1089 = vlaneseq
    %v1090 = vshrl.u32 %v1089, 7
    %v1091 = vsub.s32 %v1088, %v1090
    %v1092 = vrot.slane %v1085, %v1091
    %v1093 = vcombine.low %v1073, %v1075
    %v1095 = vunpack.c.l.s4 1983009808
    %v1096 = vunpack.c.0.s8 %v1095
    %v1097 = vlaneseq
    %v1098 = vshrl.u32 %v1097, 7
    %v1099 = vsub.s32 %v1096, %v1098
    %v1100 = vrot.slane %v1093, %v1099
    %v1101 = vcombine.low %v1074, %v1076
    %v1103 = vunpack.c.l.s4 1983009808
    %v1104 = vunpack.c.0.s8 %v1103
    %v1105 = vlaneseq
    %v1106 = vshrl.u32 %v1105, 7
    %v1107 = vsub.s32 %v1104, %v1106
    %v1108 = vrot.slane %v1101, %v1107
    %v1109 = vcombine.low %v1084, %v1092
    %v1111 = vunpack.c.l.s4 1934713408
    %v1112 = vunpack.c.0.s8 %v1111
    %v1113 = vlaneseq
    %v1114 = vshrl.u32 %v1113, 7
    %v1115 = vsub.s32 %v1112, %v1114
    %v1116 = vrot.slane %v1109, %v1115
    %v1117 = vcombine.low %v1100, %v1108
    %v1119 = vunpack.c.l.s4 1934713408
    %v1120 = vunpack.c.0.s8 %v1119
    %v1121 = vlaneseq
    %v1122 = vshrl.u32 %v1121, 7
    %v1123 = vsub.s32 %v1120, %v1122
    %v1124 = vrot.slane %v1117, %v1123
    %v1125 = vcombine.low %v1116, %v1124
    %v1126 = vcombine.high %v1116, %v1124
    %1128 = vrot.lane.b32.xlu0 %v1126, 16
    %v1129 = vpop.permute.xlu0 %1128
    %v1131 = vsel %vm113, %v1125, %v1129
    %v1132 = vld [vmem:[%s2] sm:$0xff]
    %1141 = vrot.lane.b32.xlu0 %v1069, 127
    %v1142 = vpop.permute.xlu0 %1141
    %1143 = vrot.lane.b32.xlu0 %v1070, 127
    %v1144 = vpop.permute.xlu0 %1143
    %1145 = vrot.lane.b32.xlu0 %v1071, 127
    %v1146 = vpop.permute.xlu0 %1145
    %1147 = vrot.lane.b32.xlu0 %v1072, 127
    %v1148 = vpop.permute.xlu0 %1147
    %1149 = vrot.lane.b32.xlu0 %v1073, 127
    %v1150 = vpop.permute.xlu0 %1149
    %1151 = vrot.lane.b32.xlu0 %v1074, 127
    %v1152 = vpop.permute.xlu0 %1151
    %1153 = vrot.lane.b32.xlu0 %v1075, 127
    %v1154 = vpop.permute.xlu0 %1153
    %1155 = vrot.lane.b32.xlu0 %v1076, 127
    %v1156 = vpop.permute.xlu0 %1155
    %v1165 = vcombine.low %v1142, %v1146
    %v1167 = vunpack.c.l.s4 1983009808
    %v1168 = vunpack.c.0.s8 %v1167
    %v1169 = vlaneseq
    %v1170 = vshrl.u32 %v1169, 7
    %v1171 = vsub.s32 %v1168, %v1170
    %v1172 = vrot.slane %v1165, %v1171
    %v1173 = vcombine.low %v1144, %v1148
    %v1175 = vunpack.c.l.s4 1983009808
    %v1176 = vunpack.c.0.s8 %v1175
    %v1177 = vlaneseq
    %v1178 = vshrl.u32 %v1177, 7
    %v1179 = vsub.s32 %v1176, %v1178
    %v1180 = vrot.slane %v1173, %v1179
    %v1181 = vcombine.low %v1150, %v1154
    %v1183 = vunpack.c.l.s4 1983009808
    %v1184 = vunpack.c.0.s8 %v1183
    %v1185 = vlaneseq
    %v1186 = vshrl.u32 %v1185, 7
    %v1187 = vsub.s32 %v1184, %v1186
    %v1188 = vrot.slane %v1181, %v1187
    %v1189 = vcombine.low %v1152, %v1156
    %v1191 = vunpack.c.l.s4 1983009808
    %v1192 = vunpack.c.0.s8 %v1191
    %v1193 = vlaneseq
    %v1194 = vshrl.u32 %v1193, 7
    %v1195 = vsub.s32 %v1192, %v1194
    %v1196 = vrot.slane %v1189, %v1195
    %v1197 = vcombine.low %v1172, %v1180
    %v1199 = vunpack.c.l.s4 1934713408
    %v1200 = vunpack.c.0.s8 %v1199
    %v1201 = vlaneseq
    %v1202 = vshrl.u32 %v1201, 7
    %v1203 = vsub.s32 %v1200, %v1202
    %v1204 = vrot.slane %v1197, %v1203
    %v1205 = vcombine.low %v1188, %v1196
    %v1207 = vunpack.c.l.s4 1934713408
    %v1208 = vunpack.c.0.s8 %v1207
    %v1209 = vlaneseq
    %v1210 = vshrl.u32 %v1209, 7
    %v1211 = vsub.s32 %v1208, %v1210
    %v1212 = vrot.slane %v1205, %v1211
    %v1213 = vcombine.low %v1204, %v1212
    %v1214 = vcombine.high %v1204, %v1212
    %1216 = vrot.lane.b32.xlu0 %v1214, 16
    %v1217 = vpop.permute.xlu0 %1216
    %v1219 = vsel %vm113, %v1213, %v1217
    %1221 = vrot.lane.b32.xlu0 %v1132, 120
    %v1222 = vpop.permute.xlu0 %1221
    %vm1223 = vcmask 64512
    %v1224 = vsel %vm1223, %v1222, 0
    %1226 = vmatprep.subr.mxu0 0.0
    %1227 = vmatpush1.msra.mxu0 %v1219
    %1228 = vmatprep.subr.mxu0 0.0
    %1229 = vmatpush1.msra.mxu0 0.0
    %1230 = vmatprep.subr.mxu0 0.0
    %1231 = vmatpush1.msra.mxu0 0.0
    %1232 = vmatprep.subr.mxu0 0.0
    %1233 = vmatpush1.msra.mxu0 0.0
    %1234 = vmatprep.subr.mxu0 0.0
    %1235 = vmatpush1.msra.mxu0 0.0
    %1236 = vmatprep.subr.mxu0 0.0
    %1237 = vmatpush1.msra.mxu0 0.0
    %1238 = vmatprep.subr.mxu0 0.0
    %1239 = vmatpush1.msra.mxu0 0.0
    %1240 = vmatprep.subr.mxu0 0.0
    %1241 = vmatpush1.msra.mxu0 0.0
    %1242 = vmatprep.subr.mxu0 0.0
    %1243 = vmatpush1.msra.mxu0 0.0
    %1244 = vmatprep.subr.mxu0 0.0
    %1245 = vmatpush1.msra.mxu0 0.0
    %1246 = vmatprep.subr.mxu0 0.0
    %1247 = vmatpush1.msra.mxu0 0.0
    %1248 = vmatprep.subr.mxu0 0.0
    %1249 = vmatpush1.msra.mxu0 0.0
    %1250 = vmatprep.subr.mxu0 0.0
    %1251 = vmatpush1.msra.mxu0 0.0
    %1252 = vmatprep.subr.mxu0 0.0
    %1253 = vmatpush1.msra.mxu0 0.0
    %1254 = vmatprep.subr.mxu0 0.0
    %1255 = vmatpush1.msra.mxu0 0.0
    %1256 = vmatprep.subr.mxu0 0.0
    %1257 = vmatpush1.msra.mxu0 0.0
    %1258 = vmatprep.subr.mxu0 0.0
    %1259 = vmatpush1.msra.mxu0 0.0
    %1260 = vmatprep.subr.mxu0 0.0
    %1261 = vmatpush1.msra.mxu0 0.0
    %1262 = vmatprep.subr.mxu0 0.0
    %1263 = vmatpush1.msra.mxu0 0.0
    %1264 = vmatprep.subr.mxu0 0.0
    %1265 = vmatpush1.msra.mxu0 0.0
    %1266 = vmatprep.subr.mxu0 0.0
    %1267 = vmatpush1.msra.mxu0 0.0
    %1268 = vmatprep.subr.mxu0 0.0
    %1269 = vmatpush1.msra.mxu0 0.0
    %1270 = vmatprep.subr.mxu0 0.0
    %1271 = vmatpush1.msra.mxu0 0.0
    %1272 = vmatprep.subr.mxu0 0.0
    %1273 = vmatpush1.msra.mxu0 0.0
    %1274 = vmatprep.subr.mxu0 0.0
    %1275 = vmatpush1.msra.mxu0 0.0
    %1276 = vmatprep.subr.mxu0 0.0
    %1277 = vmatpush1.msra.mxu0 0.0
    %1278 = vmatprep.subr.mxu0 0.0
    %1279 = vmatpush1.msra.mxu0 0.0
    %1280 = vmatprep.subr.mxu0 0.0
    %1281 = vmatpush1.msra.mxu0 0.0
    %1282 = vmatprep.subr.mxu0 0.0
    %1283 = vmatpush1.msra.mxu0 0.0
    %1284 = vmatprep.subr.mxu0 0.0
    %1285 = vmatpush1.msra.mxu0 0.0
    %1286 = vmatprep.subr.mxu0 0.0
    %1287 = vmatpush1.msra.mxu0 0.0
    %1288 = vmatprep.subr.mxu0 0.0
    %1289 = vmatpush1.msra.mxu0 0.0
    %1290 = vmatprep.mubr.f32.mxu0 0.0
    %1291 = vmatmul.mubr.f32.gmra.mrb[0].mxu0 %v1224
    %v1292 = vpop.f32.mrb[0].mxu0
    %v1293 = vadd.f32 0.0, %v1292
    %v1294 = vpop.f32.mrb[0].mxu0
    %1295 = vdwg.mxu0
    %v1296 = vsel %vm1223, %v1132, 0
    %1298 = vmatprep.subr.mxu0 0.0
    %1299 = vmatpush1.msra.mxu0 %v1131
    %1300 = vmatprep.subr.mxu0 0.0
    %1301 = vmatpush1.msra.mxu0 0.0
    %1302 = vmatprep.subr.mxu0 0.0
    %1303 = vmatpush1.msra.mxu0 0.0
    %1304 = vmatprep.subr.mxu0 0.0
    %1305 = vmatpush1.msra.mxu0 0.0
    %1306 = vmatprep.subr.mxu0 0.0
    %1307 = vmatpush1.msra.mxu0 0.0
    %1308 = vmatprep.subr.mxu0 0.0
    %1309 = vmatpush1.msra.mxu0 0.0
    %1310 = vmatprep.subr.mxu0 0.0
    %1311 = vmatpush1.msra.mxu0 0.0
    %1312 = vmatprep.subr.mxu0 0.0
    %1313 = vmatpush1.msra.mxu0 0.0
    %1314 = vmatprep.subr.mxu0 0.0
    %1315 = vmatpush1.msra.mxu0 0.0
    %1316 = vmatprep.subr.mxu0 0.0
    %1317 = vmatpush1.msra.mxu0 0.0
    %1318 = vmatprep.subr.mxu0 0.0
    %1319 = vmatpush1.msra.mxu0 0.0
    %1320 = vmatprep.subr.mxu0 0.0
    %1321 = vmatpush1.msra.mxu0 0.0
    %1322 = vmatprep.subr.mxu0 0.0
    %1323 = vmatpush1.msra.mxu0 0.0
    %1324 = vmatprep.subr.mxu0 0.0
    %1325 = vmatpush1.msra.mxu0 0.0
    %1326 = vmatprep.subr.mxu0 0.0
    %1327 = vmatpush1.msra.mxu0 0.0
    %1328 = vmatprep.subr.mxu0 0.0
    %1329 = vmatpush1.msra.mxu0 0.0
    %1330 = vmatprep.subr.mxu0 0.0
    %1331 = vmatpush1.msra.mxu0 0.0
    %1332 = vmatprep.subr.mxu0 0.0
    %1333 = vmatpush1.msra.mxu0 0.0
    %1334 = vmatprep.subr.mxu0 0.0
    %1335 = vmatpush1.msra.mxu0 0.0
    %1336 = vmatprep.subr.mxu0 0.0
    %1337 = vmatpush1.msra.mxu0 0.0
    %1338 = vmatprep.subr.mxu0 0.0
    %1339 = vmatpush1.msra.mxu0 0.0
    %1340 = vmatprep.subr.mxu0 0.0
    %1341 = vmatpush1.msra.mxu0 0.0
    %1342 = vmatprep.subr.mxu0 0.0
    %1343 = vmatpush1.msra.mxu0 0.0
    %1344 = vmatprep.subr.mxu0 0.0
    %1345 = vmatpush1.msra.mxu0 0.0
    %1346 = vmatprep.subr.mxu0 0.0
    %1347 = vmatpush1.msra.mxu0 0.0
    %1348 = vmatprep.subr.mxu0 0.0
    %1349 = vmatpush1.msra.mxu0 0.0
    %1350 = vmatprep.subr.mxu0 0.0
    %1351 = vmatpush1.msra.mxu0 0.0
    %1352 = vmatprep.subr.mxu0 0.0
    %1353 = vmatpush1.msra.mxu0 0.0
    %1354 = vmatprep.subr.mxu0 0.0
    %1355 = vmatpush1.msra.mxu0 0.0
    %1356 = vmatprep.subr.mxu0 0.0
    %1357 = vmatpush1.msra.mxu0 0.0
    %1358 = vmatprep.subr.mxu0 0.0
    %1359 = vmatpush1.msra.mxu0 0.0
    %1360 = vmatprep.subr.mxu0 0.0
    %1361 = vmatpush1.msra.mxu0 0.0
    %1362 = vmatprep.mubr.f32.mxu0 0.0
    %1363 = vmatmul.mubr.f32.gmra.mrb[0].mxu0 %v1296
    %v1364 = vpop.f32.mrb[0].mxu0
    %v1365 = vadd.f32 %v1293, %v1364
    %v1366 = vpop.f32.mrb[0].mxu0
    %1367 = vdwg.mxu0
    %1368 = vrot.lane.b32.xlu0 %v1069, 126
    %v1369 = vpop.permute.xlu0 %1368
    %1370 = vrot.lane.b32.xlu0 %v1070, 126
    %v1371 = vpop.permute.xlu0 %1370
    %1372 = vrot.lane.b32.xlu0 %v1071, 126
    %v1373 = vpop.permute.xlu0 %1372
    %1374 = vrot.lane.b32.xlu0 %v1072, 126
    %v1375 = vpop.permute.xlu0 %1374
    %1376 = vrot.lane.b32.xlu0 %v1073, 126
    %v1377 = vpop.permute.xlu0 %1376
    %1378 = vrot.lane.b32.xlu0 %v1074, 126
    %v1379 = vpop.permute.xlu0 %1378
    %1380 = vrot.lane.b32.xlu0 %v1075, 126
    %v1381 = vpop.permute.xlu0 %1380
    %1382 = vrot.lane.b32.xlu0 %v1076, 126
    %v1383 = vpop.permute.xlu0 %1382
    %v1392 = vcombine.low %v1369, %v1373
    %v1394 = vunpack.c.l.s4 1983009808
    %v1395 = vunpack.c.0.s8 %v1394
    %v1396 = vlaneseq
    %v1397 = vshrl.u32 %v1396, 7
    %v1398 = vsub.s32 %v1395, %v1397
    %v1399 = vrot.slane %v1392, %v1398
    %v1400 = vcombine.low %v1371, %v1375
    %v1402 = vunpack.c.l.s4 1983009808
    %v1403 = vunpack.c.0.s8 %v1402
    %v1404 = vlaneseq
    %v1405 = vshrl.u32 %v1404, 7
    %v1406 = vsub.s32 %v1403, %v1405
    %v1407 = vrot.slane %v1400, %v1406
    %v1408 = vcombine.low %v1377, %v1381
    %v1410 = vunpack.c.l.s4 1983009808
    %v1411 = vunpack.c.0.s8 %v1410
    %v1412 = vlaneseq
    %v1413 = vshrl.u32 %v1412, 7
    %v1414 = vsub.s32 %v1411, %v1413
    %v1415 = vrot.slane %v1408, %v1414
    %v1416 = vcombine.low %v1379, %v1383
    %v1418 = vunpack.c.l.s4 1983009808
    %v1419 = vunpack.c.0.s8 %v1418
    %v1420 = vlaneseq
    %v1421 = vshrl.u32 %v1420, 7
    %v1422 = vsub.s32 %v1419, %v1421
    %v1423 = vrot.slane %v1416, %v1422
    %v1424 = vcombine.low %v1399, %v1407
    %v1426 = vunpack.c.l.s4 1934713408
    %v1427 = vunpack.c.0.s8 %v1426
    %v1428 = vlaneseq
    %v1429 = vshrl.u32 %v1428, 7
    %v1430 = vsub.s32 %v1427, %v1429
    %v1431 = vrot.slane %v1424, %v1430
    %v1432 = vcombine.low %v1415, %v1423
    %v1434 = vunpack.c.l.s4 1934713408
    %v1435 = vunpack.c.0.s8 %v1434
    %v1436 = vlaneseq
    %v1437 = vshrl.u32 %v1436, 7
    %v1438 = vsub.s32 %v1435, %v1437
    %v1439 = vrot.slane %v1432, %v1438
    %v1440 = vcombine.low %v1431, %v1439
    %v1441 = vcombine.high %v1431, %v1439
    %1443 = vrot.lane.b32.xlu0 %v1441, 16
    %v1444 = vpop.permute.xlu0 %1443
    %v1446 = vsel %vm113, %v1440, %v1444
    %v1447 = vld [vmem:[%s2] sm:$0xff]
    %1449 = vrot.lane.b32.xlu0 %v1447, 112
    %v1450 = vpop.permute.xlu0 %1449
    %v1451 = vsel %vm1223, %v1450, 0
    %1453 = vmatprep.subr.mxu0 0.0
    %1454 = vmatpush1.msra.mxu0 %v1446
    %1455 = vmatprep.subr.mxu0 0.0
    %1456 = vmatpush1.msra.mxu0 0.0
    %1457 = vmatprep.subr.mxu0 0.0
    %1458 = vmatpush1.msra.mxu0 0.0
    %1459 = vmatprep.subr.mxu0 0.0
    %1460 = vmatpush1.msra.mxu0 0.0
    %1461 = vmatprep.subr.mxu0 0.0
    %1462 = vmatpush1.msra.mxu0 0.0
    %1463 = vmatprep.subr.mxu0 0.0
    %1464 = vmatpush1.msra.mxu0 0.0
    %1465 = vmatprep.subr.mxu0 0.0
    %1466 = vmatpush1.msra.mxu0 0.0
    %1467 = vmatprep.subr.mxu0 0.0
    %1468 = vmatpush1.msra.mxu0 0.0
    %1469 = vmatprep.subr.mxu0 0.0
    %1470 = vmatpush1.msra.mxu0 0.0
    %1471 = vmatprep.subr.mxu0 0.0
    %1472 = vmatpush1.msra.mxu0 0.0
    %1473 = vmatprep.subr.mxu0 0.0
    %1474 = vmatpush1.msra.mxu0 0.0
    %1475 = vmatprep.subr.mxu0 0.0
    %1476 = vmatpush1.msra.mxu0 0.0
    %1477 = vmatprep.subr.mxu0 0.0
    %1478 = vmatpush1.msra.mxu0 0.0
    %1479 = vmatprep.subr.mxu0 0.0
    %1480 = vmatpush1.msra.mxu0 0.0
    %1481 = vmatprep.subr.mxu0 0.0
    %1482 = vmatpush1.msra.mxu0 0.0
    %1483 = vmatprep.subr.mxu0 0.0
    %1484 = vmatpush1.msra.mxu0 0.0
    %1485 = vmatprep.subr.mxu0 0.0
    %1486 = vmatpush1.msra.mxu0 0.0
    %1487 = vmatprep.subr.mxu0 0.0
    %1488 = vmatpush1.msra.mxu0 0.0
    %1489 = vmatprep.subr.mxu0 0.0
    %1490 = vmatpush1.msra.mxu0 0.0
    %1491 = vmatprep.subr.mxu0 0.0
    %1492 = vmatpush1.msra.mxu0 0.0
    %1493 = vmatprep.subr.mxu0 0.0
    %1494 = vmatpush1.msra.mxu0 0.0
    %1495 = vmatprep.subr.mxu0 0.0
    %1496 = vmatpush1.msra.mxu0 0.0
    %1497 = vmatprep.subr.mxu0 0.0
    %1498 = vmatpush1.msra.mxu0 0.0
    %1499 = vmatprep.subr.mxu0 0.0
    %1500 = vmatpush1.msra.mxu0 0.0
    %1501 = vmatprep.subr.mxu0 0.0
    %1502 = vmatpush1.msra.mxu0 0.0
    %1503 = vmatprep.subr.mxu0 0.0
    %1504 = vmatpush1.msra.mxu0 0.0
    %1505 = vmatprep.subr.mxu0 0.0
    %1506 = vmatpush1.msra.mxu0 0.0
    %1507 = vmatprep.subr.mxu0 0.0
    %1508 = vmatpush1.msra.mxu0 0.0
    %1509 = vmatprep.subr.mxu0 0.0
    %1510 = vmatpush1.msra.mxu0 0.0
    %1511 = vmatprep.subr.mxu0 0.0
    %1512 = vmatpush1.msra.mxu0 0.0
    %1513 = vmatprep.subr.mxu0 0.0
    %1514 = vmatpush1.msra.mxu0 0.0
    %1515 = vmatprep.subr.mxu0 0.0
    %1516 = vmatpush1.msra.mxu0 0.0
    %1517 = vmatprep.mubr.f32.mxu0 0.0
    %1518 = vmatmul.mubr.f32.gmra.mrb[0].mxu0 %v1451
    %v1519 = vpop.f32.mrb[0].mxu0
    %v1520 = vadd.f32 0.0, %v1519
    %v1521 = vpop.f32.mrb[0].mxu0
    %1522 = vdwg.mxu0
    %v1523 = vadd.f32 %v1365, %v1520
    %1524 = vrot.lane.b32.xlu0 %v1069, 125
    %v1525 = vpop.permute.xlu0 %1524
    %1526 = vrot.lane.b32.xlu0 %v1070, 125
    %v1527 = vpop.permute.xlu0 %1526
    %1528 = vrot.lane.b32.xlu0 %v1071, 125
    %v1529 = vpop.permute.xlu0 %1528
    %1530 = vrot.lane.b32.xlu0 %v1072, 125
    %v1531 = vpop.permute.xlu0 %1530
    %1532 = vrot.lane.b32.xlu0 %v1073, 125
    %v1533 = vpop.permute.xlu0 %1532
    %1534 = vrot.lane.b32.xlu0 %v1074, 125
    %v1535 = vpop.permute.xlu0 %1534
    %1536 = vrot.lane.b32.xlu0 %v1075, 125
    %v1537 = vpop.permute.xlu0 %1536
    %1538 = vrot.lane.b32.xlu0 %v1076, 125
    %v1539 = vpop.permute.xlu0 %1538
    %v1548 = vcombine.low %v1525, %v1529
    %v1550 = vunpack.c.l.s4 1983009808
    %v1551 = vunpack.c.0.s8 %v1550
    %v1552 = vlaneseq
    %v1553 = vshrl.u32 %v1552, 7
    %v1554 = vsub.s32 %v1551, %v1553
    %v1555 = vrot.slane %v1548, %v1554
    %v1556 = vcombine.low %v1527, %v1531
    %v1558 = vunpack.c.l.s4 1983009808
    %v1559 = vunpack.c.0.s8 %v1558
    %v1560 = vlaneseq
    %v1561 = vshrl.u32 %v1560, 7
    %v1562 = vsub.s32 %v1559, %v1561
    %v1563 = vrot.slane %v1556, %v1562
    %v1564 = vcombine.low %v1533, %v1537
    %v1566 = vunpack.c.l.s4 1983009808
    %v1567 = vunpack.c.0.s8 %v1566
    %v1568 = vlaneseq
    %v1569 = vshrl.u32 %v1568, 7
    %v1570 = vsub.s32 %v1567, %v1569
    %v1571 = vrot.slane %v1564, %v1570
    %v1572 = vcombine.low %v1535, %v1539
    %v1574 = vunpack.c.l.s4 1983009808
    %v1575 = vunpack.c.0.s8 %v1574
    %v1576 = vlaneseq
    %v1577 = vshrl.u32 %v1576, 7
    %v1578 = vsub.s32 %v1575, %v1577
    %v1579 = vrot.slane %v1572, %v1578
    %v1580 = vcombine.low %v1555, %v1563
    %v1582 = vunpack.c.l.s4 1934713408
    %v1583 = vunpack.c.0.s8 %v1582
    %v1584 = vlaneseq
    %v1585 = vshrl.u32 %v1584, 7
    %v1586 = vsub.s32 %v1583, %v1585
    %v1587 = vrot.slane %v1580, %v1586
    %v1588 = vcombine.low %v1571, %v1579
    %v1590 = vunpack.c.l.s4 1934713408
    %v1591 = vunpack.c.0.s8 %v1590
    %v1592 = vlaneseq
    %v1593 = vshrl.u32 %v1592, 7
    %v1594 = vsub.s32 %v1591, %v1593
    %v1595 = vrot.slane %v1588, %v1594
    %v1596 = vcombine.low %v1587, %v1595
    %v1597 = vcombine.high %v1587, %v1595
    %1599 = vrot.lane.b32.xlu0 %v1597, 16
    %v1600 = vpop.permute.xlu0 %1599
    %v1602 = vsel %vm113, %v1596, %v1600
    %v1603 = vld [vmem:[%s2] sm:$0xff]
    %1605 = vrot.lane.b32.xlu0 %v1603, 104
    %v1606 = vpop.permute.xlu0 %1605
    %v1607 = vsel %vm1223, %v1606, 0
    %1609 = vmatprep.subr.mxu0 0.0
    %1610 = vmatpush1.msra.mxu0 %v1602
    %1611 = vmatprep.subr.mxu0 0.0
    %1612 = vmatpush1.msra.mxu0 0.0
    %1613 = vmatprep.subr.mxu0 0.0
    %1614 = vmatpush1.msra.mxu0 0.0
    %1615 = vmatprep.subr.mxu0 0.0
    %1616 = vmatpush1.msra.mxu0 0.0
    %1617 = vmatprep.subr.mxu0 0.0
    %1618 = vmatpush1.msra.mxu0 0.0
    %1619 = vmatprep.subr.mxu0 0.0
    %1620 = vmatpush1.msra.mxu0 0.0
    %1621 = vmatprep.subr.mxu0 0.0
    %1622 = vmatpush1.msra.mxu0 0.0
    %1623 = vmatprep.subr.mxu0 0.0
    %1624 = vmatpush1.msra.mxu0 0.0
    %1625 = vmatprep.subr.mxu0 0.0
    %1626 = vmatpush1.msra.mxu0 0.0
    %1627 = vmatprep.subr.mxu0 0.0
    %1628 = vmatpush1.msra.mxu0 0.0
    %1629 = vmatprep.subr.mxu0 0.0
    %1630 = vmatpush1.msra.mxu0 0.0
    %1631 = vmatprep.subr.mxu0 0.0
    %1632 = vmatpush1.msra.mxu0 0.0
    %1633 = vmatprep.subr.mxu0 0.0
    %1634 = vmatpush1.msra.mxu0 0.0
    %1635 = vmatprep.subr.mxu0 0.0
    %1636 = vmatpush1.msra.mxu0 0.0
    %1637 = vmatprep.subr.mxu0 0.0
    %1638 = vmatpush1.msra.mxu0 0.0
    %1639 = vmatprep.subr.mxu0 0.0
    %1640 = vmatpush1.msra.mxu0 0.0
    %1641 = vmatprep.subr.mxu0 0.0
    %1642 = vmatpush1.msra.mxu0 0.0
    %1643 = vmatprep.subr.mxu0 0.0
    %1644 = vmatpush1.msra.mxu0 0.0
    %1645 = vmatprep.subr.mxu0 0.0
    %1646 = vmatpush1.msra.mxu0 0.0
    %1647 = vmatprep.subr.mxu0 0.0
    %1648 = vmatpush1.msra.mxu0 0.0
    %1649 = vmatprep.subr.mxu0 0.0
    %1650 = vmatpush1.msra.mxu0 0.0
    %1651 = vmatprep.subr.mxu0 0.0
    %1652 = vmatpush1.msra.mxu0 0.0
    %1653 = vmatprep.subr.mxu0 0.0
    %1654 = vmatpush1.msra.mxu0 0.0
    %1655 = vmatprep.subr.mxu0 0.0
    %1656 = vmatpush1.msra.mxu0 0.0
    %1657 = vmatprep.subr.mxu0 0.0
    %1658 = vmatpush1.msra.mxu0 0.0
    %1659 = vmatprep.subr.mxu0 0.0
    %1660 = vmatpush1.msra.mxu0 0.0
    %1661 = vmatprep.subr.mxu0 0.0
    %1662 = vmatpush1.msra.mxu0 0.0
    %1663 = vmatprep.subr.mxu0 0.0
    %1664 = vmatpush1.msra.mxu0 0.0
    %1665 = vmatprep.subr.mxu0 0.0
    %1666 = vmatpush1.msra.mxu0 0.0
    %1667 = vmatprep.subr.mxu0 0.0
    %1668 = vmatpush1.msra.mxu0 0.0
    %1669 = vmatprep.subr.mxu0 0.0
    %1670 = vmatpush1.msra.mxu0 0.0
    %1671 = vmatprep.subr.mxu0 0.0
    %1672 = vmatpush1.msra.mxu0 0.0
    %1673 = vmatprep.mubr.f32.mxu0 0.0
    %1674 = vmatmul.mubr.f32.gmra.mrb[0].mxu0 %v1607
    %v1675 = vpop.f32.mrb[0].mxu0
    %v1676 = vadd.f32 0.0, %v1675
    %v1677 = vpop.f32.mrb[0].mxu0
    %1678 = vdwg.mxu0
    %v1679 = vadd.f32 %v1523, %v1676
    %1680 = vrot.lane.b32.xlu0 %v1069, 124
    %v1681 = vpop.permute.xlu0 %1680
    %1682 = vrot.lane.b32.xlu0 %v1070, 124
    %v1683 = vpop.permute.xlu0 %1682
    %1684 = vrot.lane.b32.xlu0 %v1071, 124
    %v1685 = vpop.permute.xlu0 %1684
    %1686 = vrot.lane.b32.xlu0 %v1072, 124
    %v1687 = vpop.permute.xlu0 %1686
    %1688 = vrot.lane.b32.xlu0 %v1073, 124
    %v1689 = vpop.permute.xlu0 %1688
    %1690 = vrot.lane.b32.xlu0 %v1074, 124
    %v1691 = vpop.permute.xlu0 %1690
    %1692 = vrot.lane.b32.xlu0 %v1075, 124
    %v1693 = vpop.permute.xlu0 %1692
    %1694 = vrot.lane.b32.xlu0 %v1076, 124
    %v1695 = vpop.permute.xlu0 %1694
    %v1704 = vcombine.low %v1681, %v1685
    %v1706 = vunpack.c.l.s4 1983009808
    %v1707 = vunpack.c.0.s8 %v1706
    %v1708 = vlaneseq
    %v1709 = vshrl.u32 %v1708, 7
    %v1710 = vsub.s32 %v1707, %v1709
    %v1711 = vrot.slane %v1704, %v1710
    %v1712 = vcombine.low %v1683, %v1687
    %v1714 = vunpack.c.l.s4 1983009808
    %v1715 = vunpack.c.0.s8 %v1714
    %v1716 = vlaneseq
    %v1717 = vshrl.u32 %v1716, 7
    %v1718 = vsub.s32 %v1715, %v1717
    %v1719 = vrot.slane %v1712, %v1718
    %v1720 = vcombine.low %v1689, %v1693
    %v1722 = vunpack.c.l.s4 1983009808
    %v1723 = vunpack.c.0.s8 %v1722
    %v1724 = vlaneseq
    %v1725 = vshrl.u32 %v1724, 7
    %v1726 = vsub.s32 %v1723, %v1725
    %v1727 = vrot.slane %v1720, %v1726
    %v1728 = vcombine.low %v1691, %v1695
    %v1730 = vunpack.c.l.s4 1983009808
    %v1731 = vunpack.c.0.s8 %v1730
    %v1732 = vlaneseq
    %v1733 = vshrl.u32 %v1732, 7
    %v1734 = vsub.s32 %v1731, %v1733
    %v1735 = vrot.slane %v1728, %v1734
    %v1736 = vcombine.low %v1711, %v1719
    %v1738 = vunpack.c.l.s4 1934713408
    %v1739 = vunpack.c.0.s8 %v1738
    %v1740 = vlaneseq
    %v1741 = vshrl.u32 %v1740, 7
    %v1742 = vsub.s32 %v1739, %v1741
    %v1743 = vrot.slane %v1736, %v1742
    %v1744 = vcombine.low %v1727, %v1735
    %v1746 = vunpack.c.l.s4 1934713408
    %v1747 = vunpack.c.0.s8 %v1746
    %v1748 = vlaneseq
    %v1749 = vshrl.u32 %v1748, 7
    %v1750 = vsub.s32 %v1747, %v1749
    %v1751 = vrot.slane %v1744, %v1750
    %v1752 = vcombine.low %v1743, %v1751
    %v1753 = vcombine.high %v1743, %v1751
    %1755 = vrot.lane.b32.xlu0 %v1753, 16
    %v1756 = vpop.permute.xlu0 %1755
    %v1758 = vsel %vm113, %v1752, %v1756
    %v1759 = vld [vmem:[%s2] sm:$0xff]
    %1761 = vrot.lane.b32.xlu0 %v1759, 96
    %v1762 = vpop.permute.xlu0 %1761
    %v1763 = vsel %vm1223, %v1762, 0
    %1765 = vmatprep.subr.mxu0 0.0
    %1766 = vmatpush1.msra.mxu0 %v1758
    %1767 = vmatprep.subr.mxu0 0.0
    %1768 = vmatpush1.msra.mxu0 0.0
    %1769 = vmatprep.subr.mxu0 0.0
    %1770 = vmatpush1.msra.mxu0 0.0
    %1771 = vmatprep.subr.mxu0 0.0
    %1772 = vmatpush1.msra.mxu0 0.0
    %1773 = vmatprep.subr.mxu0 0.0
    %1774 = vmatpush1.msra.mxu0 0.0
    %1775 = vmatprep.subr.mxu0 0.0
    %1776 = vmatpush1.msra.mxu0 0.0
    %1777 = vmatprep.subr.mxu0 0.0
    %1778 = vmatpush1.msra.mxu0 0.0
    %1779 = vmatprep.subr.mxu0 0.0
    %1780 = vmatpush1.msra.mxu0 0.0
    %1781 = vmatprep.subr.mxu0 0.0
    %1782 = vmatpush1.msra.mxu0 0.0
    %1783 = vmatprep.subr.mxu0 0.0
    %1784 = vmatpush1.msra.mxu0 0.0
    %1785 = vmatprep.subr.mxu0 0.0
    %1786 = vmatpush1.msra.mxu0 0.0
    %1787 = vmatprep.subr.mxu0 0.0
    %1788 = vmatpush1.msra.mxu0 0.0
    %1789 = vmatprep.subr.mxu0 0.0
    %1790 = vmatpush1.msra.mxu0 0.0
    %1791 = vmatprep.subr.mxu0 0.0
    %1792 = vmatpush1.msra.mxu0 0.0
    %1793 = vmatprep.subr.mxu0 0.0
    %1794 = vmatpush1.msra.mxu0 0.0
    %1795 = vmatprep.subr.mxu0 0.0
    %1796 = vmatpush1.msra.mxu0 0.0
    %1797 = vmatprep.subr.mxu0 0.0
    %1798 = vmatpush1.msra.mxu0 0.0
    %1799 = vmatprep.subr.mxu0 0.0
    %1800 = vmatpush1.msra.mxu0 0.0
    %1801 = vmatprep.subr.mxu0 0.0
    %1802 = vmatpush1.msra.mxu0 0.0
    %1803 = vmatprep.subr.mxu0 0.0
    %1804 = vmatpush1.msra.mxu0 0.0
    %1805 = vmatprep.subr.mxu0 0.0
    %1806 = vmatpush1.msra.mxu0 0.0
    %1807 = vmatprep.subr.mxu0 0.0
    %1808 = vmatpush1.msra.mxu0 0.0
    %1809 = vmatprep.subr.mxu0 0.0
    %1810 = vmatpush1.msra.mxu0 0.0
    %1811 = vmatprep.subr.mxu0 0.0
    %1812 = vmatpush1.msra.mxu0 0.0
    %1813 = vmatprep.subr.mxu0 0.0
    %1814 = vmatpush1.msra.mxu0 0.0
    %1815 = vmatprep.subr.mxu0 0.0
    %1816 = vmatpush1.msra.mxu0 0.0
    %1817 = vmatprep.subr.mxu0 0.0
    %1818 = vmatpush1.msra.mxu0 0.0
    %1819 = vmatprep.subr.mxu0 0.0
    %1820 = vmatpush1.msra.mxu0 0.0
    %1821 = vmatprep.subr.mxu0 0.0
    %1822 = vmatpush1.msra.mxu0 0.0
    %1823 = vmatprep.subr.mxu0 0.0
    %1824 = vmatpush1.msra.mxu0 0.0
    %1825 = vmatprep.subr.mxu0 0.0
    %1826 = vmatpush1.msra.mxu0 0.0
    %1827 = vmatprep.subr.mxu0 0.0
    %1828 = vmatpush1.msra.mxu0 0.0
    %1829 = vmatprep.mubr.f32.mxu0 0.0
    %1830 = vmatmul.mubr.f32.gmra.mrb[0].mxu0 %v1763
    %v1831 = vpop.f32.mrb[0].mxu0
    %v1832 = vadd.f32 0.0, %v1831
    %v1833 = vpop.f32.mrb[0].mxu0
    %1834 = vdwg.mxu0
    %v1835 = vadd.f32 %v1679, %v1832
    %v1836 = vsel %vm927, %v1835, 0.0
    %1837 = vadd.xlane.f32.xlu0 %v1836
    %v1838 = vpop.xlane.xlu0 %1837
    %v1839 = vmul.f32 %v1835, %v1835
    %v1840 = vsel %vm927, %v1839, 0.0
    %1841 = vadd.xlane.f32.xlu0 %v1840
    %v1842 = vpop.xlane.xlu0 %1841
    %v1843 = vmul.f32 %v1838, 0.03125
    %v1844 = vmul.f32 %v1842, 0.03125
    %v1845 = vmul.f32 %v1843, %v1843
    %v1846 = vsub.f32 %v1844, %v1845
    %v1847 = vmax.f32 %v1846, 0.0
    %v1848 = vsub.f32 %v1835, %v1843
    %v1849 = vadd.f32 %v1847, 1e-05
    %v1850 = vrsqrt.pop %v1849
    %v1851 = vmul.f32 %v1848, %v1850
    %v1852 = vld [vmem:[%s5] sm:$0xff]
    %1854 = vset.pattern.permute.xlu0 1
    %1855 = vperm.xlu0 %1854, %v1852
    %v1856 = vpop.permute.xlu0 %1855
    %v1858 = vmul.f32 %v1851, %v1856
    %1859 = vset.pattern.permute.xlu0 5
    %1860 = vperm.xlu0 %1859, %v1852
    %v1861 = vpop.permute.xlu0 %1860
    %v1863 = vadd.f32 %v1858, %v1861
    %v1864 = vmax.f32 %v1863, 0.0
    %1866 = vrot.lane.b32.xlu0 %v1864, 112
    %v1867 = vpop.permute.xlu0 %1866
    %v1869 = vcombine.high %v1864, 0.0
    %v1871 = vunpack.c.l.s4 1983009808
    %v1872 = vunpack.c.0.s8 %v1871
    %v1873 = vlaneseq
    %v1874 = vshrl.u32 %v1873, 7
    %v1875 = vsub.s32 %v1872, %v1874
    %v1876 = vrot.slane %v1864, %v1875
    %v1878 = vunpack.c.l.s4 1983009808
    %v1879 = vunpack.c.0.s8 %v1878
    %v1880 = vlaneseq
    %v1881 = vshrl.u32 %v1880, 7
    %v1882 = vsub.s32 %v1879, %v1881
    %v1883 = vrot.slane %v1869, %v1882
    %v1884 = vcombine.high %v1867, 0.0
    %v1886 = vunpack.c.l.s4 1983009808
    %v1887 = vunpack.c.0.s8 %v1886
    %v1888 = vlaneseq
    %v1889 = vshrl.u32 %v1888, 7
    %v1890 = vsub.s32 %v1887, %v1889
    %v1891 = vrot.slane %v1867, %v1890
    %v1893 = vunpack.c.l.s4 1983009808
    %v1894 = vunpack.c.0.s8 %v1893
    %v1895 = vlaneseq
    %v1896 = vshrl.u32 %v1895, 7
    %v1897 = vsub.s32 %v1894, %v1896
    %v1898 = vrot.slane %v1884, %v1897
    %v1899 = vcombine.low %v1876, %v1891
    %v1900 = vcombine.high %v1876, %v1891
    %v1902 = vunpack.c.l.s4 1934713408
    %v1903 = vunpack.c.0.s8 %v1902
    %v1904 = vlaneseq
    %v1905 = vshrl.u32 %v1904, 7
    %v1906 = vsub.s32 %v1903, %v1905
    %v1907 = vrot.slane %v1899, %v1906
    %v1909 = vunpack.c.l.s4 1934713408
    %v1910 = vunpack.c.0.s8 %v1909
    %v1911 = vlaneseq
    %v1912 = vshrl.u32 %v1911, 7
    %v1913 = vsub.s32 %v1910, %v1912
    %v1914 = vrot.slane %v1900, %v1913
    %v1915 = vcombine.low %v1883, %v1898
    %v1916 = vcombine.high %v1883, %v1898
    %v1918 = vunpack.c.l.s4 1934713408
    %v1919 = vunpack.c.0.s8 %v1918
    %v1920 = vlaneseq
    %v1921 = vshrl.u32 %v1920, 7
    %v1922 = vsub.s32 %v1919, %v1921
    %v1923 = vrot.slane %v1915, %v1922
    %v1925 = vunpack.c.l.s4 1934713408
    %v1926 = vunpack.c.0.s8 %v1925
    %v1927 = vlaneseq
    %v1928 = vshrl.u32 %v1927, 7
    %v1929 = vsub.s32 %v1926, %v1928
    %v1930 = vrot.slane %v1916, %v1929
    %v1931 = vcombine.high %v1907, 0.0
    %v1932 = vcombine.high %v1914, 0.0
    %v1933 = vcombine.high %v1923, 0.0
    %v1934 = vcombine.high %v1930, 0.0
    %1943 = vrot.lane.b32.xlu0 %v1907, 1
    %v1944 = vpop.permute.xlu0 %1943
    %1945 = vrot.lane.b32.xlu0 %v1931, 1
    %v1946 = vpop.permute.xlu0 %1945
    %1947 = vrot.lane.b32.xlu0 %v1914, 1
    %v1948 = vpop.permute.xlu0 %1947
    %1949 = vrot.lane.b32.xlu0 %v1932, 1
    %v1950 = vpop.permute.xlu0 %1949
    %1951 = vrot.lane.b32.xlu0 %v1923, 1
    %v1952 = vpop.permute.xlu0 %1951
    %1953 = vrot.lane.b32.xlu0 %v1933, 1
    %v1954 = vpop.permute.xlu0 %1953
    %1955 = vrot.lane.b32.xlu0 %v1930, 1
    %v1956 = vpop.permute.xlu0 %1955
    %1957 = vrot.lane.b32.xlu0 %v1934, 1
    %v1958 = vpop.permute.xlu0 %1957
    %vm1967 = vcmask 7168
    %v1968 = vsel %vm1967, 0.0, %v1944
    %v1969 = vsel %vm1967, 0.0, %v1946
    %v1970 = vsel %vm1967, 0.0, %v1948
    %v1971 = vsel %vm1967, 0.0, %v1950
    %v1972 = vsel %vm1967, 0.0, %v1952
    %v1973 = vsel %vm1967, 0.0, %v1954
    %v1974 = vsel %vm1967, 0.0, %v1956
    %v1975 = vsel %vm1967, 0.0, %v1958
    %vm1976 = vcmask 138240
    %v1977 = vsel %vm1976, %v1968, 0.0
    %v1978 = vsel %vm1976, %v1969, 0.0
    %v1979 = vsel %vm1976, %v1970, 0.0
    %v1980 = vsel %vm1976, %v1971, 0.0
    %v1981 = vsel %vm1976, %v1972, 0.0
    %v1982 = vsel %vm1976, %v1973, 0.0
    %v1983 = vsel %vm1976, %v1974, 0.0
    %v1984 = vsel %vm1976, %v1975, 0.0
    %v1985 = vcombine.low %v1977, %v1979
    %v1987 = vunpack.c.l.s4 1983009808
    %v1988 = vunpack.c.0.s8 %v1987
    %v1989 = vlaneseq
    %v1990 = vshrl.u32 %v1989, 7
    %v1991 = vsub.s32 %v1988, %v1990
    %v1992 = vrot.slane %v1985, %v1991
    %v1993 = vcombine.low %v1978, %v1980
    %v1995 = vunpack.c.l.s4 1983009808
    %v1996 = vunpack.c.0.s8 %v1995
    %v1997 = vlaneseq
    %v1998 = vshrl.u32 %v1997, 7
    %v1999 = vsub.s32 %v1996, %v1998
    %v2000 = vrot.slane %v1993, %v1999
    %v2001 = vcombine.low %v1981, %v1983
    %v2003 = vunpack.c.l.s4 1983009808
    %v2004 = vunpack.c.0.s8 %v2003
    %v2005 = vlaneseq
    %v2006 = vshrl.u32 %v2005, 7
    %v2007 = vsub.s32 %v2004, %v2006
    %v2008 = vrot.slane %v2001, %v2007
    %v2009 = vcombine.low %v1982, %v1984
    %v2011 = vunpack.c.l.s4 1983009808
    %v2012 = vunpack.c.0.s8 %v2011
    %v2013 = vlaneseq
    %v2014 = vshrl.u32 %v2013, 7
    %v2015 = vsub.s32 %v2012, %v2014
    %v2016 = vrot.slane %v2009, %v2015
    %v2017 = vcombine.low %v1992, %v2000
    %v2019 = vunpack.c.l.s4 1934713408
    %v2020 = vunpack.c.0.s8 %v2019
    %v2021 = vlaneseq
    %v2022 = vshrl.u32 %v2021, 7
    %v2023 = vsub.s32 %v2020, %v2022
    %v2024 = vrot.slane %v2017, %v2023
    %v2025 = vcombine.low %v2008, %v2016
    %v2027 = vunpack.c.l.s4 1934713408
    %v2028 = vunpack.c.0.s8 %v2027
    %v2029 = vlaneseq
    %v2030 = vshrl.u32 %v2029, 7
    %v2031 = vsub.s32 %v2028, %v2030
    %v2032 = vrot.slane %v2025, %v2031
    %v2033 = vcombine.low %v2024, %v2032
    %v2034 = vcombine.high %v2024, %v2032
    %2036 = vrot.lane.b32.xlu0 %v2034, 16
    %v2037 = vpop.permute.xlu0 %2036
    %v2039 = vsel %vm113, %v2033, %v2037
    %v2040 = vld [vmem:[%s3] sm:$0xff]
    %2049 = vrot.lane.b32.xlu0 %v1977, 127
    %v2050 = vpop.permute.xlu0 %2049
    %2051 = vrot.lane.b32.xlu0 %v1978, 127
    %v2052 = vpop.permute.xlu0 %2051
    %2053 = vrot.lane.b32.xlu0 %v1979, 127
    %v2054 = vpop.permute.xlu0 %2053
    %2055 = vrot.lane.b32.xlu0 %v1980, 127
    %v2056 = vpop.permute.xlu0 %2055
    %2057 = vrot.lane.b32.xlu0 %v1981, 127
    %v2058 = vpop.permute.xlu0 %2057
    %2059 = vrot.lane.b32.xlu0 %v1982, 127
    %v2060 = vpop.permute.xlu0 %2059
    %2061 = vrot.lane.b32.xlu0 %v1983, 127
    %v2062 = vpop.permute.xlu0 %2061
    %2063 = vrot.lane.b32.xlu0 %v1984, 127
    %v2064 = vpop.permute.xlu0 %2063
    %v2073 = vcombine.low %v2050, %v2054
    %v2075 = vunpack.c.l.s4 1983009808
    %v2076 = vunpack.c.0.s8 %v2075
    %v2077 = vlaneseq
    %v2078 = vshrl.u32 %v2077, 7
    %v2079 = vsub.s32 %v2076, %v2078
    %v2080 = vrot.slane %v2073, %v2079
    %v2081 = vcombine.low %v2052, %v2056
    %v2083 = vunpack.c.l.s4 1983009808
    %v2084 = vunpack.c.0.s8 %v2083
    %v2085 = vlaneseq
    %v2086 = vshrl.u32 %v2085, 7
    %v2087 = vsub.s32 %v2084, %v2086
    %v2088 = vrot.slane %v2081, %v2087
    %v2089 = vcombine.low %v2058, %v2062
    %v2091 = vunpack.c.l.s4 1983009808
    %v2092 = vunpack.c.0.s8 %v2091
    %v2093 = vlaneseq
    %v2094 = vshrl.u32 %v2093, 7
    %v2095 = vsub.s32 %v2092, %v2094
    %v2096 = vrot.slane %v2089, %v2095
    %v2097 = vcombine.low %v2060, %v2064
    %v2099 = vunpack.c.l.s4 1983009808
    %v2100 = vunpack.c.0.s8 %v2099
    %v2101 = vlaneseq
    %v2102 = vshrl.u32 %v2101, 7
    %v2103 = vsub.s32 %v2100, %v2102
    %v2104 = vrot.slane %v2097, %v2103
    %v2105 = vcombine.low %v2080, %v2088
    %v2107 = vunpack.c.l.s4 1934713408
    %v2108 = vunpack.c.0.s8 %v2107
    %v2109 = vlaneseq
    %v2110 = vshrl.u32 %v2109, 7
    %v2111 = vsub.s32 %v2108, %v2110
    %v2112 = vrot.slane %v2105, %v2111
    %v2113 = vcombine.low %v2096, %v2104
    %v2115 = vunpack.c.l.s4 1934713408
    %v2116 = vunpack.c.0.s8 %v2115
    %v2117 = vlaneseq
    %v2118 = vshrl.u32 %v2117, 7
    %v2119 = vsub.s32 %v2116, %v2118
    %v2120 = vrot.slane %v2113, %v2119
    %v2121 = vcombine.low %v2112, %v2120
    %v2122 = vcombine.high %v2112, %v2120
    %2124 = vrot.lane.b32.xlu0 %v2122, 16
    %v2125 = vpop.permute.xlu0 %2124
    %v2127 = vsel %vm113, %v2121, %v2125
    %2129 = vrot.lane.b32.xlu0 %v2040, 120
    %v2130 = vpop.permute.xlu0 %2129
    %v2131 = vsel %vm1223, %v2130, 0
    %2133 = vmatprep.subr.mxu0 0.0
    %2134 = vmatpush1.msra.mxu0 %v2127
    %2135 = vmatprep.subr.mxu0 0.0
    %2136 = vmatpush1.msra.mxu0 0.0
    %2137 = vmatprep.subr.mxu0 0.0
    %2138 = vmatpush1.msra.mxu0 0.0
    %2139 = vmatprep.subr.mxu0 0.0
    %2140 = vmatpush1.msra.mxu0 0.0
    %2141 = vmatprep.subr.mxu0 0.0
    %2142 = vmatpush1.msra.mxu0 0.0
    %2143 = vmatprep.subr.mxu0 0.0
    %2144 = vmatpush1.msra.mxu0 0.0
    %2145 = vmatprep.subr.mxu0 0.0
    %2146 = vmatpush1.msra.mxu0 0.0
    %2147 = vmatprep.subr.mxu0 0.0
    %2148 = vmatpush1.msra.mxu0 0.0
    %2149 = vmatprep.subr.mxu0 0.0
    %2150 = vmatpush1.msra.mxu0 0.0
    %2151 = vmatprep.subr.mxu0 0.0
    %2152 = vmatpush1.msra.mxu0 0.0
    %2153 = vmatprep.subr.mxu0 0.0
    %2154 = vmatpush1.msra.mxu0 0.0
    %2155 = vmatprep.subr.mxu0 0.0
    %2156 = vmatpush1.msra.mxu0 0.0
    %2157 = vmatprep.subr.mxu0 0.0
    %2158 = vmatpush1.msra.mxu0 0.0
    %2159 = vmatprep.subr.mxu0 0.0
    %2160 = vmatpush1.msra.mxu0 0.0
    %2161 = vmatprep.subr.mxu0 0.0
    %2162 = vmatpush1.msra.mxu0 0.0
    %2163 = vmatprep.subr.mxu0 0.0
    %2164 = vmatpush1.msra.mxu0 0.0
    %2165 = vmatprep.subr.mxu0 0.0
    %2166 = vmatpush1.msra.mxu0 0.0
    %2167 = vmatprep.subr.mxu0 0.0
    %2168 = vmatpush1.msra.mxu0 0.0
    %2169 = vmatprep.subr.mxu0 0.0
    %2170 = vmatpush1.msra.mxu0 0.0
    %2171 = vmatprep.subr.mxu0 0.0
    %2172 = vmatpush1.msra.mxu0 0.0
    %2173 = vmatprep.subr.mxu0 0.0
    %2174 = vmatpush1.msra.mxu0 0.0
    %2175 = vmatprep.subr.mxu0 0.0
    %2176 = vmatpush1.msra.mxu0 0.0
    %2177 = vmatprep.subr.mxu0 0.0
    %2178 = vmatpush1.msra.mxu0 0.0
    %2179 = vmatprep.subr.mxu0 0.0
    %2180 = vmatpush1.msra.mxu0 0.0
    %2181 = vmatprep.subr.mxu0 0.0
    %2182 = vmatpush1.msra.mxu0 0.0
    %2183 = vmatprep.subr.mxu0 0.0
    %2184 = vmatpush1.msra.mxu0 0.0
    %2185 = vmatprep.subr.mxu0 0.0
    %2186 = vmatpush1.msra.mxu0 0.0
    %2187 = vmatprep.subr.mxu0 0.0
    %2188 = vmatpush1.msra.mxu0 0.0
    %2189 = vmatprep.subr.mxu0 0.0
    %2190 = vmatpush1.msra.mxu0 0.0
    %2191 = vmatprep.subr.mxu0 0.0
    %2192 = vmatpush1.msra.mxu0 0.0
    %2193 = vmatprep.subr.mxu0 0.0
    %2194 = vmatpush1.msra.mxu0 0.0
    %2195 = vmatprep.subr.mxu0 0.0
    %2196 = vmatpush1.msra.mxu0 0.0
    %2197 = vmatprep.mubr.f32.mxu0 0.0
    %2198 = vmatmul.mubr.f32.gmra.mrb[0].mxu0 %v2131
    %v2199 = vpop.f32.mrb[0].mxu0
    %v2200 = vadd.f32 0.0, %v2199
    %v2201 = vpop.f32.mrb[0].mxu0
    %2202 = vdwg.mxu0
    %v2203 = vsel %vm1223, %v2040, 0
    %2205 = vmatprep.subr.mxu0 0.0
    %2206 = vmatpush1.msra.mxu0 %v2039
    %2207 = vmatprep.subr.mxu0 0.0
    %2208 = vmatpush1.msra.mxu0 0.0
    %2209 = vmatprep.subr.mxu0 0.0
    %2210 = vmatpush1.msra.mxu0 0.0
    %2211 = vmatprep.subr.mxu0 0.0
    %2212 = vmatpush1.msra.mxu0 0.0
    %2213 = vmatprep.subr.mxu0 0.0
    %2214 = vmatpush1.msra.mxu0 0.0
    %2215 = vmatprep.subr.mxu0 0.0
    %2216 = vmatpush1.msra.mxu0 0.0
    %2217 = vmatprep.subr.mxu0 0.0
    %2218 = vmatpush1.msra.mxu0 0.0
    %2219 = vmatprep.subr.mxu0 0.0
    %2220 = vmatpush1.msra.mxu0 0.0
    %2221 = vmatprep.subr.mxu0 0.0
    %2222 = vmatpush1.msra.mxu0 0.0
    %2223 = vmatprep.subr.mxu0 0.0
    %2224 = vmatpush1.msra.mxu0 0.0
    %2225 = vmatprep.subr.mxu0 0.0
    %2226 = vmatpush1.msra.mxu0 0.0
    %2227 = vmatprep.subr.mxu0 0.0
    %2228 = vmatpush1.msra.mxu0 0.0
    %2229 = vmatprep.subr.mxu0 0.0
    %2230 = vmatpush1.msra.mxu0 0.0
    %2231 = vmatprep.subr.mxu0 0.0
    %2232 = vmatpush1.msra.mxu0 0.0
    %2233 = vmatprep.subr.mxu0 0.0
    %2234 = vmatpush1.msra.mxu0 0.0
    %2235 = vmatprep.subr.mxu0 0.0
    %2236 = vmatpush1.msra.mxu0 0.0
    %2237 = vmatprep.subr.mxu0 0.0
    %2238 = vmatpush1.msra.mxu0 0.0
    %2239 = vmatprep.subr.mxu0 0.0
    %2240 = vmatpush1.msra.mxu0 0.0
    %2241 = vmatprep.subr.mxu0 0.0
    %2242 = vmatpush1.msra.mxu0 0.0
    %2243 = vmatprep.subr.mxu0 0.0
    %2244 = vmatpush1.msra.mxu0 0.0
    %2245 = vmatprep.subr.mxu0 0.0
    %2246 = vmatpush1.msra.mxu0 0.0
    %2247 = vmatprep.subr.mxu0 0.0
    %2248 = vmatpush1.msra.mxu0 0.0
    %2249 = vmatprep.subr.mxu0 0.0
    %2250 = vmatpush1.msra.mxu0 0.0
    %2251 = vmatprep.subr.mxu0 0.0
    %2252 = vmatpush1.msra.mxu0 0.0
    %2253 = vmatprep.subr.mxu0 0.0
    %2254 = vmatpush1.msra.mxu0 0.0
    %2255 = vmatprep.subr.mxu0 0.0
    %2256 = vmatpush1.msra.mxu0 0.0
    %2257 = vmatprep.subr.mxu0 0.0
    %2258 = vmatpush1.msra.mxu0 0.0
    %2259 = vmatprep.subr.mxu0 0.0
    %2260 = vmatpush1.msra.mxu0 0.0
    %2261 = vmatprep.subr.mxu0 0.0
    %2262 = vmatpush1.msra.mxu0 0.0
    %2263 = vmatprep.subr.mxu0 0.0
    %2264 = vmatpush1.msra.mxu0 0.0
    %2265 = vmatprep.subr.mxu0 0.0
    %2266 = vmatpush1.msra.mxu0 0.0
    %2267 = vmatprep.subr.mxu0 0.0
    %2268 = vmatpush1.msra.mxu0 0.0
    %2269 = vmatprep.mubr.f32.mxu0 0.0
    %2270 = vmatmul.mubr.f32.gmra.mrb[0].mxu0 %v2203
    %v2271 = vpop.f32.mrb[0].mxu0
    %v2272 = vadd.f32 %v2200, %v2271
    %v2273 = vpop.f32.mrb[0].mxu0
    %2274 = vdwg.mxu0
    %2275 = vrot.lane.b32.xlu0 %v1977, 126
    %v2276 = vpop.permute.xlu0 %2275
    %2277 = vrot.lane.b32.xlu0 %v1978, 126
    %v2278 = vpop.permute.xlu0 %2277
    %2279 = vrot.lane.b32.xlu0 %v1979, 126
    %v2280 = vpop.permute.xlu0 %2279
    %2281 = vrot.lane.b32.xlu0 %v1980, 126
    %v2282 = vpop.permute.xlu0 %2281
    %2283 = vrot.lane.b32.xlu0 %v1981, 126
    %v2284 = vpop.permute.xlu0 %2283
    %2285 = vrot.lane.b32.xlu0 %v1982, 126
    %v2286 = vpop.permute.xlu0 %2285
    %2287 = vrot.lane.b32.xlu0 %v1983, 126
    %v2288 = vpop.permute.xlu0 %2287
    %2289 = vrot.lane.b32.xlu0 %v1984, 126
    %v2290 = vpop.permute.xlu0 %2289
    %v2299 = vcombine.low %v2276, %v2280
    %v2301 = vunpack.c.l.s4 1983009808
    %v2302 = vunpack.c.0.s8 %v2301
    %v2303 = vlaneseq
    %v2304 = vshrl.u32 %v2303, 7
    %v2305 = vsub.s32 %v2302, %v2304
    %v2306 = vrot.slane %v2299, %v2305
    %v2307 = vcombine.low %v2278, %v2282
    %v2309 = vunpack.c.l.s4 1983009808
    %v2310 = vunpack.c.0.s8 %v2309
    %v2311 = vlaneseq
    %v2312 = vshrl.u32 %v2311, 7
    %v2313 = vsub.s32 %v2310, %v2312
    %v2314 = vrot.slane %v2307, %v2313
    %v2315 = vcombine.low %v2284, %v2288
    %v2317 = vunpack.c.l.s4 1983009808
    %v2318 = vunpack.c.0.s8 %v2317
    %v2319 = vlaneseq
    %v2320 = vshrl.u32 %v2319, 7
    %v2321 = vsub.s32 %v2318, %v2320
    %v2322 = vrot.slane %v2315, %v2321
    %v2323 = vcombine.low %v2286, %v2290
    %v2325 = vunpack.c.l.s4 1983009808
    %v2326 = vunpack.c.0.s8 %v2325
    %v2327 = vlaneseq
    %v2328 = vshrl.u32 %v2327, 7
    %v2329 = vsub.s32 %v2326, %v2328
    %v2330 = vrot.slane %v2323, %v2329
    %v2331 = vcombine.low %v2306, %v2314
    %v2333 = vunpack.c.l.s4 1934713408
    %v2334 = vunpack.c.0.s8 %v2333
    %v2335 = vlaneseq
    %v2336 = vshrl.u32 %v2335, 7
    %v2337 = vsub.s32 %v2334, %v2336
    %v2338 = vrot.slane %v2331, %v2337
    %v2339 = vcombine.low %v2322, %v2330
    %v2341 = vunpack.c.l.s4 1934713408
    %v2342 = vunpack.c.0.s8 %v2341
    %v2343 = vlaneseq
    %v2344 = vshrl.u32 %v2343, 7
    %v2345 = vsub.s32 %v2342, %v2344
    %v2346 = vrot.slane %v2339, %v2345
    %v2347 = vcombine.low %v2338, %v2346
    %v2348 = vcombine.high %v2338, %v2346
    %2350 = vrot.lane.b32.xlu0 %v2348, 16
    %v2351 = vpop.permute.xlu0 %2350
    %v2353 = vsel %vm113, %v2347, %v2351
    %v2354 = vld [vmem:[%s3] sm:$0xff]
    %2356 = vrot.lane.b32.xlu0 %v2354, 112
    %v2357 = vpop.permute.xlu0 %2356
    %v2358 = vsel %vm1223, %v2357, 0
    %2360 = vmatprep.subr.mxu0 0.0
    %2361 = vmatpush1.msra.mxu0 %v2353
    %2362 = vmatprep.subr.mxu0 0.0
    %2363 = vmatpush1.msra.mxu0 0.0
    %2364 = vmatprep.subr.mxu0 0.0
    %2365 = vmatpush1.msra.mxu0 0.0
    %2366 = vmatprep.subr.mxu0 0.0
    %2367 = vmatpush1.msra.mxu0 0.0
    %2368 = vmatprep.subr.mxu0 0.0
    %2369 = vmatpush1.msra.mxu0 0.0
    %2370 = vmatprep.subr.mxu0 0.0
    %2371 = vmatpush1.msra.mxu0 0.0
    %2372 = vmatprep.subr.mxu0 0.0
    %2373 = vmatpush1.msra.mxu0 0.0
    %2374 = vmatprep.subr.mxu0 0.0
    %2375 = vmatpush1.msra.mxu0 0.0
    %2376 = vmatprep.subr.mxu0 0.0
    %2377 = vmatpush1.msra.mxu0 0.0
    %2378 = vmatprep.subr.mxu0 0.0
    %2379 = vmatpush1.msra.mxu0 0.0
    %2380 = vmatprep.subr.mxu0 0.0
    %2381 = vmatpush1.msra.mxu0 0.0
    %2382 = vmatprep.subr.mxu0 0.0
    %2383 = vmatpush1.msra.mxu0 0.0
    %2384 = vmatprep.subr.mxu0 0.0
    %2385 = vmatpush1.msra.mxu0 0.0
    %2386 = vmatprep.subr.mxu0 0.0
    %2387 = vmatpush1.msra.mxu0 0.0
    %2388 = vmatprep.subr.mxu0 0.0
    %2389 = vmatpush1.msra.mxu0 0.0
    %2390 = vmatprep.subr.mxu0 0.0
    %2391 = vmatpush1.msra.mxu0 0.0
    %2392 = vmatprep.subr.mxu0 0.0
    %2393 = vmatpush1.msra.mxu0 0.0
    %2394 = vmatprep.subr.mxu0 0.0
    %2395 = vmatpush1.msra.mxu0 0.0
    %2396 = vmatprep.subr.mxu0 0.0
    %2397 = vmatpush1.msra.mxu0 0.0
    %2398 = vmatprep.subr.mxu0 0.0
    %2399 = vmatpush1.msra.mxu0 0.0
    %2400 = vmatprep.subr.mxu0 0.0
    %2401 = vmatpush1.msra.mxu0 0.0
    %2402 = vmatprep.subr.mxu0 0.0
    %2403 = vmatpush1.msra.mxu0 0.0
    %2404 = vmatprep.subr.mxu0 0.0
    %2405 = vmatpush1.msra.mxu0 0.0
    %2406 = vmatprep.subr.mxu0 0.0
    %2407 = vmatpush1.msra.mxu0 0.0
    %2408 = vmatprep.subr.mxu0 0.0
    %2409 = vmatpush1.msra.mxu0 0.0
    %2410 = vmatprep.subr.mxu0 0.0
    %2411 = vmatpush1.msra.mxu0 0.0
    %2412 = vmatprep.subr.mxu0 0.0
    %2413 = vmatpush1.msra.mxu0 0.0
    %2414 = vmatprep.subr.mxu0 0.0
    %2415 = vmatpush1.msra.mxu0 0.0
    %2416 = vmatprep.subr.mxu0 0.0
    %2417 = vmatpush1.msra.mxu0 0.0
    %2418 = vmatprep.subr.mxu0 0.0
    %2419 = vmatpush1.msra.mxu0 0.0
    %2420 = vmatprep.subr.mxu0 0.0
    %2421 = vmatpush1.msra.mxu0 0.0
    %2422 = vmatprep.subr.mxu0 0.0
    %2423 = vmatpush1.msra.mxu0 0.0
    %2424 = vmatprep.mubr.f32.mxu0 0.0
    %2425 = vmatmul.mubr.f32.gmra.mrb[0].mxu0 %v2358
    %v2426 = vpop.f32.mrb[0].mxu0
    %v2427 = vadd.f32 0.0, %v2426
    %v2428 = vpop.f32.mrb[0].mxu0
    %2429 = vdwg.mxu0
    %v2430 = vadd.f32 %v2272, %v2427
    %v2431 = vsel %vm927, %v2430, 0.0
    %2432 = vadd.xlane.f32.xlu0 %v2431
    %v2433 = vpop.xlane.xlu0 %2432
    %v2434 = vmul.f32 %v2430, %v2430
    %v2435 = vsel %vm927, %v2434, 0.0
    %2436 = vadd.xlane.f32.xlu0 %v2435
    %v2437 = vpop.xlane.xlu0 %2436
    %v2438 = vmul.f32 %v2433, 0.03125
    %v2439 = vmul.f32 %v2437, 0.03125
    %v2440 = vmul.f32 %v2438, %v2438
    %v2441 = vsub.f32 %v2439, %v2440
    %v2442 = vmax.f32 %v2441, 0.0
    %v2443 = vsub.f32 %v2430, %v2438
    %v2444 = vadd.f32 %v2442, 1e-05
    %v2445 = vrsqrt.pop %v2444
    %v2446 = vmul.f32 %v2443, %v2445
    %v2447 = vld [vmem:[%s5] sm:$0xff]
    %2449 = vset.pattern.permute.xlu0 2
    %2450 = vperm.xlu0 %2449, %v2447
    %v2451 = vpop.permute.xlu0 %2450
    %v2453 = vmul.f32 %v2446, %v2451
    %2454 = vset.pattern.permute.xlu0 6
    %2455 = vperm.xlu0 %2454, %v2447
    %v2456 = vpop.permute.xlu0 %2455
    %v2458 = vadd.f32 %v2453, %v2456
    %v2459 = vcombine.low %v48, %v55
    %v2461 = vunpack.c.l.s4 1983009808
    %v2462 = vunpack.c.0.s8 %v2461
    %v2463 = vlaneseq
    %v2464 = vshrl.u32 %v2463, 7
    %v2465 = vsub.s32 %v2462, %v2464
    %v2466 = vrot.slane %v2459, %v2465
    %v2467 = vcombine.low %v56, %v57
    %v2469 = vunpack.c.l.s4 1983009808
    %v2470 = vunpack.c.0.s8 %v2469
    %v2471 = vlaneseq
    %v2472 = vshrl.u32 %v2471, 7
    %v2473 = vsub.s32 %v2470, %v2472
    %v2474 = vrot.slane %v2467, %v2473
    %v2475 = vcombine.low %v2466, %v2474
    %v2477 = vunpack.c.l.s4 1934713408
    %v2478 = vunpack.c.0.s8 %v2477
    %v2479 = vlaneseq
    %v2480 = vshrl.u32 %v2479, 7
    %v2481 = vsub.s32 %v2478, %v2480
    %v2482 = vrot.slane %v2475, %v2481
    %v2483 = vcombine.high %v2482, 0.0
    %2485 = vrot.lane.b32.xlu0 %v2483, 16
    %v2486 = vpop.permute.xlu0 %2485
    %v2488 = vsel %vm113, %v2482, %v2486
    %v2489 = vld [vmem:[%s4] sm:$0xff]
    %v2491 = vsel %vm165, %v2489, 0
    %v2494 = vsel %vm168, %v2488, 0
    %2496 = vmatprep.subr.mxu0 0.0
    %2497 = vmatpush1.msra.mxu0 %v2494
    %2498 = vmatprep.subr.mxu0 0.0
    %2499 = vmatpush1.msra.mxu0 0.0
    %2500 = vmatprep.subr.mxu0 0.0
    %2501 = vmatpush1.msra.mxu0 0.0
    %2502 = vmatprep.subr.mxu0 0.0
    %2503 = vmatpush1.msra.mxu0 0.0
    %2504 = vmatprep.subr.mxu0 0.0
    %2505 = vmatpush1.msra.mxu0 0.0
    %2506 = vmatprep.subr.mxu0 0.0
    %2507 = vmatpush1.msra.mxu0 0.0
    %2508 = vmatprep.subr.mxu0 0.0
    %2509 = vmatpush1.msra.mxu0 0.0
    %2510 = vmatprep.subr.mxu0 0.0
    %2511 = vmatpush1.msra.mxu0 0.0
    %2512 = vmatprep.subr.mxu0 0.0
    %2513 = vmatpush1.msra.mxu0 0.0
    %2514 = vmatprep.subr.mxu0 0.0
    %2515 = vmatpush1.msra.mxu0 0.0
    %2516 = vmatprep.subr.mxu0 0.0
    %2517 = vmatpush1.msra.mxu0 0.0
    %2518 = vmatprep.subr.mxu0 0.0
    %2519 = vmatpush1.msra.mxu0 0.0
    %2520 = vmatprep.subr.mxu0 0.0
    %2521 = vmatpush1.msra.mxu0 0.0
    %2522 = vmatprep.subr.mxu0 0.0
    %2523 = vmatpush1.msra.mxu0 0.0
    %2524 = vmatprep.subr.mxu0 0.0
    %2525 = vmatpush1.msra.mxu0 0.0
    %2526 = vmatprep.subr.mxu0 0.0
    %2527 = vmatpush1.msra.mxu0 0.0
    %2528 = vmatprep.subr.mxu0 0.0
    %2529 = vmatpush1.msra.mxu0 0.0
    %2530 = vmatprep.subr.mxu0 0.0
    %2531 = vmatpush1.msra.mxu0 0.0
    %2532 = vmatprep.subr.mxu0 0.0
    %2533 = vmatpush1.msra.mxu0 0.0
    %2534 = vmatprep.subr.mxu0 0.0
    %2535 = vmatpush1.msra.mxu0 0.0
    %2536 = vmatprep.subr.mxu0 0.0
    %2537 = vmatpush1.msra.mxu0 0.0
    %2538 = vmatprep.subr.mxu0 0.0
    %2539 = vmatpush1.msra.mxu0 0.0
    %2540 = vmatprep.subr.mxu0 0.0
    %2541 = vmatpush1.msra.mxu0 0.0
    %2542 = vmatprep.subr.mxu0 0.0
    %2543 = vmatpush1.msra.mxu0 0.0
    %2544 = vmatprep.subr.mxu0 0.0
    %2545 = vmatpush1.msra.mxu0 0.0
    %2546 = vmatprep.subr.mxu0 0.0
    %2547 = vmatpush1.msra.mxu0 0.0
    %2548 = vmatprep.subr.mxu0 0.0
    %2549 = vmatpush1.msra.mxu0 0.0
    %2550 = vmatprep.subr.mxu0 0.0
    %2551 = vmatpush1.msra.mxu0 0.0
    %2552 = vmatprep.subr.mxu0 0.0
    %2553 = vmatpush1.msra.mxu0 0.0
    %2554 = vmatprep.subr.mxu0 0.0
    %2555 = vmatpush1.msra.mxu0 0.0
    %2556 = vmatprep.subr.mxu0 0.0
    %2557 = vmatpush1.msra.mxu0 0.0
    %2558 = vmatprep.subr.mxu0 0.0
    %2559 = vmatpush1.msra.mxu0 0.0
    %2560 = vmatprep.mubr.f32.mxu0 0.0
    %2561 = vmatmul.mubr.f32.gmra.mrb[0].mxu0 %v2491
    %v2562 = vpop.f32.mrb[0].mxu0
    %v2563 = vadd.f32 0.0, %v2562
    %v2564 = vpop.f32.mrb[0].mxu0
    %2565 = vdwg.mxu0
    %v2566 = vsel %vm927, %v2563, 0.0
    %2567 = vadd.xlane.f32.xlu0 %v2566
    %v2568 = vpop.xlane.xlu0 %2567
    %v2569 = vmul.f32 %v2563, %v2563
    %v2570 = vsel %vm927, %v2569, 0.0
    %2571 = vadd.xlane.f32.xlu0 %v2570
    %v2572 = vpop.xlane.xlu0 %2571
    %v2573 = vmul.f32 %v2568, 0.03125
    %v2574 = vmul.f32 %v2572, 0.03125
    %v2575 = vmul.f32 %v2573, %v2573
    %v2576 = vsub.f32 %v2574, %v2575
    %v2577 = vmax.f32 %v2576, 0.0
    %v2578 = vsub.f32 %v2563, %v2573
    %v2579 = vadd.f32 %v2577, 1e-05
    %v2580 = vrsqrt.pop %v2579
    %v2581 = vmul.f32 %v2578, %v2580
    %v2582 = vld [vmem:[%s5] sm:$0xff]
    %2584 = vset.pattern.permute.xlu0 3
    %2585 = vperm.xlu0 %2584, %v2582
    %v2586 = vpop.permute.xlu0 %2585
    %v2588 = vmul.f32 %v2581, %v2586
    %2589 = vset.pattern.permute.xlu0 7
    %2590 = vperm.xlu0 %2589, %v2582
    %v2591 = vpop.permute.xlu0 %2590
    %v2593 = vadd.f32 %v2588, %v2591
    %v2594 = vadd.f32 %v2458, %v2593
    %v2595 = vmax.f32 %v2594, 0.0
    %2597 = vrot.lane.b32.xlu0 %v2595, 112
    %v2598 = vpop.permute.xlu0 %2597
    %v2600 = vcombine.high %v2595, 0.0
    %v2602 = vunpack.c.l.s4 1983009808
    %v2603 = vunpack.c.0.s8 %v2602
    %v2604 = vlaneseq
    %v2605 = vshrl.u32 %v2604, 7
    %v2606 = vsub.s32 %v2603, %v2605
    %v2607 = vrot.slane %v2595, %v2606
    %v2609 = vunpack.c.l.s4 1983009808
    %v2610 = vunpack.c.0.s8 %v2609
    %v2611 = vlaneseq
    %v2612 = vshrl.u32 %v2611, 7
    %v2613 = vsub.s32 %v2610, %v2612
    %v2614 = vrot.slane %v2600, %v2613
    %v2615 = vcombine.high %v2598, 0.0
    %v2617 = vunpack.c.l.s4 1983009808
    %v2618 = vunpack.c.0.s8 %v2617
    %v2619 = vlaneseq
    %v2620 = vshrl.u32 %v2619, 7
    %v2621 = vsub.s32 %v2618, %v2620
    %v2622 = vrot.slane %v2598, %v2621
    %v2624 = vunpack.c.l.s4 1983009808
    %v2625 = vunpack.c.0.s8 %v2624
    %v2626 = vlaneseq
    %v2627 = vshrl.u32 %v2626, 7
    %v2628 = vsub.s32 %v2625, %v2627
    %v2629 = vrot.slane %v2615, %v2628
    %v2630 = vcombine.low %v2607, %v2622
    %v2631 = vcombine.high %v2607, %v2622
    %v2633 = vunpack.c.l.s4 1934713408
    %v2634 = vunpack.c.0.s8 %v2633
    %v2635 = vlaneseq
    %v2636 = vshrl.u32 %v2635, 7
    %v2637 = vsub.s32 %v2634, %v2636
    %v2638 = vrot.slane %v2630, %v2637
    %v2640 = vunpack.c.l.s4 1934713408
    %v2641 = vunpack.c.0.s8 %v2640
    %v2642 = vlaneseq
    %v2643 = vshrl.u32 %v2642, 7
    %v2644 = vsub.s32 %v2641, %v2643
    %v2645 = vrot.slane %v2631, %v2644
    %v2646 = vcombine.low %v2614, %v2629
    %v2647 = vcombine.high %v2614, %v2629
    %v2649 = vunpack.c.l.s4 1934713408
    %v2650 = vunpack.c.0.s8 %v2649
    %v2651 = vlaneseq
    %v2652 = vshrl.u32 %v2651, 7
    %v2653 = vsub.s32 %v2650, %v2652
    %v2654 = vrot.slane %v2646, %v2653
    %v2656 = vunpack.c.l.s4 1934713408
    %v2657 = vunpack.c.0.s8 %v2656
    %v2658 = vlaneseq
    %v2659 = vshrl.u32 %v2658, 7
    %v2660 = vsub.s32 %v2657, %v2659
    %v2661 = vrot.slane %v2647, %v2660
    %v2662 = vcombine.high %v2638, 0.0
    %v2663 = vcombine.high %v2645, 0.0
    %v2664 = vcombine.high %v2654, 0.0
    %v2665 = vcombine.high %v2661, 0.0
    %v2666 = vcombine.low %v2638, %v2645
    %v2668 = vunpack.c.l.s4 1983009808
    %v2669 = vunpack.c.0.s8 %v2668
    %v2670 = vlaneseq
    %v2671 = vshrl.u32 %v2670, 7
    %v2672 = vsub.s32 %v2669, %v2671
    %v2673 = vrot.slane %v2666, %v2672
    %v2674 = vcombine.low %v2662, %v2663
    %v2676 = vunpack.c.l.s4 1983009808
    %v2677 = vunpack.c.0.s8 %v2676
    %v2678 = vlaneseq
    %v2679 = vshrl.u32 %v2678, 7
    %v2680 = vsub.s32 %v2677, %v2679
    %v2681 = vrot.slane %v2674, %v2680
    %v2682 = vcombine.low %v2654, %v2661
    %v2684 = vunpack.c.l.s4 1983009808
    %v2685 = vunpack.c.0.s8 %v2684
    %v2686 = vlaneseq
    %v2687 = vshrl.u32 %v2686, 7
    %v2688 = vsub.s32 %v2685, %v2687
    %v2689 = vrot.slane %v2682, %v2688
    %v2690 = vcombine.low %v2664, %v2665
    %v2692 = vunpack.c.l.s4 1983009808
    %v2693 = vunpack.c.0.s8 %v2692
    %v2694 = vlaneseq
    %v2695 = vshrl.u32 %v2694, 7
    %v2696 = vsub.s32 %v2693, %v2695
    %v2697 = vrot.slane %v2690, %v2696
    %v2698 = vcombine.low %v2673, %v2681
    %v2700 = vunpack.c.l.s4 1934713408
    %v2701 = vunpack.c.0.s8 %v2700
    %v2702 = vlaneseq
    %v2703 = vshrl.u32 %v2702, 7
    %v2704 = vsub.s32 %v2701, %v2703
    %v2705 = vrot.slane %v2698, %v2704
    %v2706 = vcombine.low %v2689, %v2697
    %v2708 = vunpack.c.l.s4 1934713408
    %v2709 = vunpack.c.0.s8 %v2708
    %v2710 = vlaneseq
    %v2711 = vshrl.u32 %v2710, 7
    %v2712 = vsub.s32 %v2709, %v2711
    %v2713 = vrot.slane %v2706, %v2712
    %v2714 = vcombine.low %v2705, %v2713
    %v2715 = vcombine.high %v2705, %v2713
    %2716 = vst.msk [vmem:[#allocation2] sm:$0xff] %vm113, %v2714
    %2717 = vst.msk [vmem:[#allocation2 + $0x8] sm:$0xff] %vm113, %v2715
    // Predicated region
    $region26: #{res_block_forward.1} parent=1 // pred_check
      _
    $region27: #{res_block_forward.1} parent=1 // pred_check_branch
      %2719 = sbr.rel (0) target = $region29
    $region28: #{res_block_forward.1} parent=1 // pred_region
      %s2721 = ssub.s32 256, 256
      %2722 = vsyncadd [#allocation3], %s2721
      %s2723 = sshll.u32 [#allocation2], 4
      %s2724 = int_to_ptr.vmem [resolvable:$true] %s2723
      %2729 = dma.vmem_to_hbm [thread:$0]  %s2724, 256, %s6, [#allocation3], 128, 128, 8
    $region29: #{res_block_forward.1} parent=1 // pred_fallthru
      _
    // Predicated region
    $region30: #{res_block_forward.1} parent=1 // pred_check
      _
    $region31: #{res_block_forward.1} parent=1 // pred_check_branch
      %2731 = sbr.rel (0) target = $region33
    $region32: #{res_block_forward.1} parent=1 // pred_region
      %2732 = dma.done [#allocation3], 256
    $region33: #{res_block_forward.1} parent=1 // pred_fallthru
      _
    %2733 = vsyncpa [#allocation3], 1

</llo_original>
